<compile_context>
chip_gen: v7x
topology: tpu7x:2x2x1
jax: 0.10.0
libtpu: 0.0.40
codegen_flags: <defaults>
</compile_context>

<pallas_src>
import functools
import math

import jax
import jax.numpy as jnp
from jax.experimental import pallas as pl
from jax.experimental.pallas import tpu as pltpu


def encoder_loop_kernel(x_ref, mask_ref,
                        wqkv_ref, bqkv_ref, wo_ref, bo_ref,
                        w1_ref, b1_ref, w2_ref, b2_ref,
                        g1_ref, be1_ref, g2_ref, be2_ref,
                        o_ref, *, num_heads):
    Bt, S, D = x_ref.shape
    H = num_heads
    hd = D // H
    M = Bt * S
    scale = 1.0 / math.sqrt(hd)
    eps = 1e-5

    # f32 copy of the input block, flattened to (M, D) so every dense matmul and
    # LayerNorm operates on a single MXU/VPU-friendly 2-D slab.
    x = x_ref[...].astype(jnp.float32).reshape(M, D)
    xb = x.astype(jnp.bfloat16)

    # ---- fused QKV projection: bf16 MXU operands, f32 accumulate ----
    qkv = jnp.dot(xb, wqkv_ref[...], preferred_element_type=jnp.float32) + bqkv_ref[...]
    q = qkv[:, 0 * D:1 * D] * scale            # pre-scale q in f32 (S*D muls, not S*S)
    k = qkv[:, 1 * D:2 * D]
    v = qkv[:, 2 * D:3 * D]

    def to_heads(t):
        # (M, D) -> (H*Bt, S, hd) with batch index = h*Bt + b.
        # Only leading-dim reshapes around one documented lane-aware relayout.
        t = t.reshape(M, H, hd)
        t = pltpu.einshape("mhd->hmd", t)      # (H, M, hd)
        return t.reshape(H * Bt, S, hd)

    qh = to_heads(q).astype(jnp.bfloat16)
    kh = to_heads(k).astype(jnp.bfloat16)
    vh = to_heads(v).astype(jnp.bfloat16)

    # Additive key mask, broadcast to the (H*Bt) attention batch (batch index h*Bt + b).
    addm = jnp.broadcast_to(mask_ref[...][None], (H, Bt, 1, S)).reshape(H * Bt, 1, S)

    # ---- multi-head self-attention: single batched QK^T / softmax / PV ----
    # TODO(synk): for S >= a few hundred, add a flash-style query-tile grid axis instead
    # of materialising the full (H*Bt, S, S) score tensor.
    s = jnp.einsum('bqd,bkd->bqk', qh, kh,
                   preferred_element_type=jnp.float32) + addm        # (HB, S, S) f32
    m = jnp.max(s, axis=-1, keepdims=True)
    p = jnp.exp(s - m)                                               # f32 softmax numerics
    l = jnp.sum(p, axis=-1, keepdims=True)
    ctx = jnp.einsum('bqk,bkd->bqd', p.astype(jnp.bfloat16), vh,
                     preferred_element_type=jnp.float32)             # (HB, S, hd) f32
    # Normalise AFTER the PV matmul; exact reciprocal on the small (HB, S, 1) vector.
    ctx = ctx * pl.reciprocal(l, approx=False)

    # heads -> lanes: inverse of to_heads, then straight into the bf16 out-projection
    # (no scratch store / reload).
    ctx = ctx.reshape(H, M, hd)
    ctx = pltpu.einshape("hmd->mhd", ctx)
    ctx = ctx.reshape(M, D)
    attn = jnp.dot(ctx.astype(jnp.bfloat16), wo_ref[...],
                   preferred_element_type=jnp.float32) + bo_ref[...]

    def layernorm(y, g, beta):
        mu = jnp.mean(y, axis=-1, keepdims=True)
        var = jnp.mean((y - mu) ** 2, axis=-1, keepdims=True)
        return (y - mu) * jax.lax.rsqrt(var + eps) * g + beta

    # ---- residual + norm1 ----
    h1 = layernorm(attn + x, g1_ref[...], be1_ref[...])

    # ---- feed-forward (lin1 -> relu -> lin2) ----
    # TODO(synk): nn.Dropout omitted (inference semantics; identity when not training).
    ff = jnp.maximum(jnp.dot(h1.astype(jnp.bfloat16), w1_ref[...],
                             preferred_element_type=jnp.float32) + b1_ref[...], 0.0)
    ff = jnp.dot(ff.astype(jnp.bfloat16), w2_ref[...],
                 preferred_element_type=jnp.float32) + b2_ref[...]

    # ---- residual + norm2 ----
    out = layernorm(ff + h1, g2_ref[...], be2_ref[...])
    o_ref[...] = out.reshape(Bt, S, D).astype(o_ref.dtype)


def _vmem_capacity_bytes():
    try:
        return int(pltpu.get_tpu_info().vmem_capacity_bytes)
    except Exception:
        return 64 << 20            # conservative fallback (v7x per-TC VMEM)


def _vmem_need_bytes(bt, S, D, H, wbytes):
    """Rough per-step VMEM requirement for block size bt."""
    M = bt * S
    blk_x = M * D * 4
    blk_mask = bt * S * 4
    # qkv f32 + bf16 head copies + f32 scores (+ bf16 p) + ctx / h1 / ff slabs
    act = (3 * M * D * 4) + (3 * M * D * 2) + (H * bt * S * S * 6) + (5 * M * D * 4)
    # Weights are pipeline double-buffered.
    # TODO(synk): pl.Buffered(1) on the constant-index weight BlockSpecs would halve
    # this term on v7x once single-buffering is robust in the pallas_call pipeline.
    return 2 * wbytes + 2 * (2 * blk_x + blk_mask) + act + (4 << 20)


def _pick_block_b(B, S, D, H, wbytes, budget):
    """Fuse batch rows per grid step; keep >=2 grid steps; fit the VMEM budget."""
    target_rows = 512 if budget >= (80 << 20) else 256      # bigger slab on 128 MiB parts
    bt = max(1, min(B, max(1, target_rows // max(S, 1))))
    while B % bt:
        bt -= 1
    # Keep at least 2 grid steps so the "parallel" axis can split across v7x's 2 TCs.
    while bt > 1 and B // bt < 2:
        bt -= 1
        while B % bt:
            bt -= 1
    # Shrink the block until the VMEM estimate fits the per-generation budget.
    while bt > 1 and _vmem_need_bytes(bt, S, D, H, wbytes) > budget:
        bt -= 1
        while B % bt:
            bt -= 1
    return bt


def encoder_loop(x, key_padding_mask, params, num_heads):
    """x: (B, S, D) float32; key_padding_mask: (B, S) bool (True == masked key)."""
    B, S, D = x.shape
    # TODO(synk): for production, pad D (and head_dim) to multiples of 128 in the wrapper
    # to avoid masked partial stores; left unpadded here since LN statistics over padded
    # features would need extra masking.
    addmask = jnp.where(key_padding_mask, -1e9, 0.0).astype(jnp.float32).reshape(B, 1, S)

    wbytes = sum(int(v.size) * v.dtype.itemsize for v in params.values())
    budget = max(int(_vmem_capacity_bytes() * 0.9), 32 << 20)
    Bt = _pick_block_b(B, S, D, num_heads, wbytes, budget)
    grid = (B // Bt,)

    need = _vmem_need_bytes(Bt, S, D, num_heads, wbytes)
    vmem_limit = int(min(max(need, 32 << 20), budget))

    full = lambda shape: pl.BlockSpec(shape, lambda b: (0,) * len(shape))
    in_specs = [
        pl.BlockSpec((Bt, S, D), lambda b: (b, 0, 0)),     # x
        pl.BlockSpec((Bt, 1, S), lambda b: (b, 0, 0)),     # additive key mask
        full((D, 3 * D)), full((1, 3 * D)),                # in_proj  W (bf16), b (f32)
        full((D, D)), full((1, D)),                        # out_proj W (bf16), b
        full((D, D)), full((1, D)),                        # lin1     W (bf16), b
        full((D, D)), full((1, D)),                        # lin2     W (bf16), b
        full((1, D)), full((1, D)),                        # norm1    gamma, beta
        full((1, D)), full((1, D)),                        # norm2    gamma, beta
    ]

    cost = pl.CostEstimate(
        flops=12 * B * S * D * D + 4 * B * S * S * D,
        transcendentals=B * num_heads * S * S + 4 * B * S,
        bytes_accessed=wbytes + 2 * B * S * D * 4 + B * S * 4,
    )

    kernel = functools.partial(encoder_loop_kernel, num_heads=num_heads)
    return pl.pallas_call(
        kernel,
        out_shape=jax.ShapeDtypeStruct((B, S, D), x.dtype),
        grid_spec=pltpu.PrefetchScalarGridSpec(
            num_scalar_prefetch=0,
            grid=grid,
            in_specs=in_specs,
            out_specs=pl.BlockSpec((Bt, S, D), lambda b: (b, 0, 0)),
            scratch_shapes=[],
        ),
        compiler_params=pltpu.CompilerParams(
            dimension_semantics=("parallel",),
            vmem_limit_bytes=vmem_limit,
        ),
        cost_estimate=cost,
    )(x, addmask,
      params["wqkv"], params["bqkv"], params["wo"], params["bo"],
      params["w1"], params["b1"], params["w2"], params["b2"],
      params["g1"], params["be1"], params["g2"], params["be2"])


def encoder_loop_ref(x, key_padding_mask, params, num_heads):
    """Pure-JAX (f32) reference mirroring PyTorch eval-mode semantics."""
    B, S, D = x.shape
    hd = D // num_heads
    addmask = jnp.where(key_padding_mask, -1e9, 0.0)[:, None, None, :]        # (B,1,1,S)
    qkv = x @ params["wqkv"].astype(jnp.float32) + params["bqkv"]             # (B,S,3D)
    q, k, v = jnp.split(qkv, 3, axis=-1)

    def split_heads(t):                                                       # (B,H,S,hd)
        return t.reshape(B, S, num_heads, hd).transpose(0, 2, 1, 3)

    q, k, v = split_heads(q), split_heads(k), split_heads(v)
    s = jnp.einsum("bhqd,bhkd->bhqk", q, k) / jnp.sqrt(hd) + addmask
    p = jax.nn.softmax(s, axis=-1)
    attn = jnp.einsum("bhqk,bhkd->bhqd", p, v).transpose(0, 2, 1, 3).reshape(B, S, D)
    attn = attn @ params["wo"].astype(jnp.float32) + params["bo"]

    def ln(y, g, b):
        mu = y.mean(-1, keepdims=True)
        var = ((y - mu) ** 2).mean(-1, keepdims=True)
        return (y - mu) / jnp.sqrt(var + 1e-5) * g + b

    h1 = ln(attn + x, params["g1"], params["be1"])
    ff = jax.nn.relu(h1 @ params["w1"].astype(jnp.float32) + params["b1"])
    ff = ff @ params["w2"].astype(jnp.float32) + params["b2"]
    return ln(ff + h1, params["g2"], params["be2"])


def init_params(key, d_model):
    ks = jax.random.split(key, 8)
    s = 0.05
    wdt = jnp.bfloat16   # store matmul weights in bf16 (MXU-native, half the HBM/VMEM bytes)
    return {
        "wqkv": (s * jax.random.normal(ks[0], (d_model, 3 * d_model), jnp.float32)).astype(wdt),
        "bqkv": s * jax.random.normal(ks[1], (1, 3 * d_model), jnp.float32),
        "wo":   (s * jax.random.normal(ks[2], (d_model, d_model), jnp.float32)).astype(wdt),
        "bo":   s * jax.random.normal(ks[3], (1, d_model), jnp.float32),
        "w1":   (s * jax.random.normal(ks[4], (d_model, d_model), jnp.float32)).astype(wdt),
        "b1":   s * jax.random.normal(ks[5], (1, d_model), jnp.float32),
        "w2":   (s * jax.random.normal(ks[6], (d_model, d_model), jnp.float32)).astype(wdt),
        "b2":   s * jax.random.normal(ks[7], (1, d_model), jnp.float32),
        "g1":   jnp.ones((1, d_model), jnp.float32),
        "be1":  jnp.zeros((1, d_model), jnp.float32),
        "g2":   jnp.ones((1, d_model), jnp.float32),
        "be2":  jnp.zeros((1, d_model), jnp.float32),
    }


if __name__ == "__main__":
    B, S, D, H = 2, 8, 32, 4
    key = jax.random.PRNGKey(0)
    kx, kp = jax.random.split(key)

    x = jax.random.normal(kx, (B, S, D), jnp.float32)
    # key_padding_mask: True == padded/masked key. Mask last 2 keys of batch 1.
    mask = jnp.zeros((B, S), jnp.bool_).at[1, -2:].set(True)
    params = init_params(kp, D)

    out = encoder_loop(x, mask, params, num_heads=H)
    out = jax.block_until_ready(out)

    ref = encoder_loop_ref(x, mask, params, num_heads=H)
    assert out.shape == (B, S, D)
    # bf16 MXU operands -> looser tolerance vs. the f32 reference.
    assert jnp.allclose(out, ref, atol=3e-2, rtol=3e-2), "mismatch vs JAX reference"
    print("KERNEL_OK")
</pallas_src>

<mosaic_0001>
module attributes {stable_mosaic.version = 11 : i64} {
  func.func @encoder_loop_kernel(%arg0: i32, %arg1: memref<1x8x32xf32, #tpu.memory_space<vmem>>, %arg2: memref<1x1x8xf32, #tpu.memory_space<vmem>>, %arg3: memref<32x96xbf16, #tpu.memory_space<vmem>>, %arg4: memref<1x96xf32, #tpu.memory_space<vmem>>, %arg5: memref<32x32xbf16, #tpu.memory_space<vmem>>, %arg6: memref<1x32xf32, #tpu.memory_space<vmem>>, %arg7: memref<32x32xbf16, #tpu.memory_space<vmem>>, %arg8: memref<1x32xf32, #tpu.memory_space<vmem>>, %arg9: memref<32x32xbf16, #tpu.memory_space<vmem>>, %arg10: memref<1x32xf32, #tpu.memory_space<vmem>>, %arg11: memref<1x32xf32, #tpu.memory_space<vmem>>, %arg12: memref<1x32xf32, #tpu.memory_space<vmem>>, %arg13: memref<1x32xf32, #tpu.memory_space<vmem>>, %arg14: memref<1x32xf32, #tpu.memory_space<vmem>>, %arg15: memref<1x8x32xf32, #tpu.memory_space<vmem>>) attributes {dimension_semantics = [#tpu.dimension_semantics<parallel>], iteration_bounds = array<i64: 2>, scalar_prefetch = 0 : i64, scratch_operands = 0 : i64, tpu.core_type = #tpu.core_type<tc>, window_params = [{transform_indices = @transform_0, window_bounds = array<i64: 1, 8, 32>}, {transform_indices = @transform_1, window_bounds = array<i64: 1, 1, 8>}, {pipeline_mode = #tpu.pipeline_mode<synchronous>, transform_indices = @transform_2, window_bounds = array<i64: 32, 96>}, {pipeline_mode = #tpu.pipeline_mode<synchronous>, transform_indices = @transform_3, window_bounds = array<i64: 1, 96>}, {pipeline_mode = #tpu.pipeline_mode<synchronous>, transform_indices = @transform_4, window_bounds = array<i64: 32, 32>}, {pipeline_mode = #tpu.pipeline_mode<synchronous>, transform_indices = @transform_5, window_bounds = array<i64: 1, 32>}, {pipeline_mode = #tpu.pipeline_mode<synchronous>, transform_indices = @transform_6, window_bounds = array<i64: 32, 32>}, {pipeline_mode = #tpu.pipeline_mode<synchronous>, transform_indices = @transform_7, window_bounds = array<i64: 1, 32>}, {pipeline_mode = #tpu.pipeline_mode<synchronous>, transform_indices = @transform_8, window_bounds = array<i64: 32, 32>}, {pipeline_mode = #tpu.pipeline_mode<synchronous>, transform_indices = @transform_9, window_bounds = array<i64: 1, 32>}, {pipeline_mode = #tpu.pipeline_mode<synchronous>, transform_indices = @transform_10, window_bounds = array<i64: 1, 32>}, {pipeline_mode = #tpu.pipeline_mode<synchronous>, transform_indices = @transform_11, window_bounds = array<i64: 1, 32>}, {pipeline_mode = #tpu.pipeline_mode<synchronous>, transform_indices = @transform_12, window_bounds = array<i64: 1, 32>}, {pipeline_mode = #tpu.pipeline_mode<synchronous>, transform_indices = @transform_13, window_bounds = array<i64: 1, 32>}, {transform_indices = @transform_14, window_bounds = array<i64: 1, 8, 32>}]} {
    %c0 = arith.constant 0 : index
    %c0_0 = arith.constant 0 : index
    %c0_1 = arith.constant 0 : index
    %0 = vector.load %arg1[%c0, %c0_0, %c0_1] : memref<1x8x32xf32, #tpu.memory_space<vmem>>, vector<1x8x32xf32>
    %1 = vector.shape_cast %0 : vector<1x8x32xf32> to vector<8x32xf32>
    %2 = arith.truncf %1 : vector<8x32xf32> to vector<8x32xbf16>
    %c0_2 = arith.constant 0 : index
    %c0_3 = arith.constant 0 : index
    %3 = vector.load %arg3[%c0_2, %c0_3] : memref<32x96xbf16, #tpu.memory_space<vmem>>, vector<32x96xbf16>
    %cst = arith.constant dense<0.000000e+00> : vector<8x96xf32>
    %4 = tpu.matmul %2, %3, %cst {dimension_numbers = #tpu.dot_dimension_numbers<[1], [0], [0], [1], [0, 0, 1, 1], [], []>} : vector<8x32xbf16>, vector<32x96xbf16>, vector<8x96xf32> -> vector<8x96xf32>
    %c0_4 = arith.constant 0 : index
    %c0_5 = arith.constant 0 : index
    %5 = vector.load %arg4[%c0_4, %c0_5] : memref<1x96xf32, #tpu.memory_space<vmem>>, vector<1x96xf32>
    %6 = vector.broadcast %5 : vector<1x96xf32> to vector<8x96xf32>
    %7 = arith.addf %4, %6 : vector<8x96xf32>
    %8 = vector.extract_strided_slice %7 {offsets = [0, 0], sizes = [8, 32], strides = [1, 1]} : vector<8x96xf32> to vector<8x32xf32>
    %cst_6 = arith.constant 0.353553385 : f32
    %9 = vector.broadcast %cst_6 : f32 to vector<8x32xf32>
    %10 = arith.mulf %8, %9 : vector<8x32xf32>
    %11 = vector.extract_strided_slice %7 {offsets = [0, 32], sizes = [8, 32], strides = [1, 1]} : vector<8x96xf32> to vector<8x32xf32>
    %12 = vector.extract_strided_slice %7 {offsets = [0, 64], sizes = [8, 32], strides = [1, 1]} : vector<8x96xf32> to vector<8x32xf32>
    %13 = vector.shape_cast %10 : vector<8x32xf32> to vector<8x4x8xf32>
    %14 = tpu.transpose %13, [1, 0, 2] : vector<8x4x8xf32> -> vector<4x8x8xf32>
    %15 = arith.truncf %14 : vector<4x8x8xf32> to vector<4x8x8xbf16>
    %16 = vector.shape_cast %11 : vector<8x32xf32> to vector<8x4x8xf32>
    %17 = tpu.transpose %16, [1, 0, 2] : vector<8x4x8xf32> -> vector<4x8x8xf32>
    %18 = arith.truncf %17 : vector<4x8x8xf32> to vector<4x8x8xbf16>
    %19 = vector.shape_cast %12 : vector<8x32xf32> to vector<8x4x8xf32>
    %20 = tpu.transpose %19, [1, 0, 2] : vector<8x4x8xf32> -> vector<4x8x8xf32>
    %21 = arith.truncf %20 : vector<4x8x8xf32> to vector<4x8x8xbf16>
    %c0_7 = arith.constant 0 : index
    %c0_8 = arith.constant 0 : index
    %c0_9 = arith.constant 0 : index
    %22 = vector.load %arg2[%c0_7, %c0_8, %c0_9] : memref<1x1x8xf32, #tpu.memory_space<vmem>>, vector<1x1x8xf32>
    %23 = vector.shape_cast %22 : vector<1x1x8xf32> to vector<1x1x1x8xf32>
    %24 = vector.shape_cast %23 : vector<1x1x1x8xf32> to vector<1x1x1x8xf32>
    %25 = vector.broadcast %24 : vector<1x1x1x8xf32> to vector<4x1x1x8xf32>
    %26 = vector.shape_cast %25 : vector<4x1x1x8xf32> to vector<4x1x8xf32>
    "tpu.trace_start"() <{level = 10 : i32, message = "bqd,bkd->bqk"}> : () -> ()
    %cst_10 = arith.constant dense<0.000000e+00> : vector<4x8x8xf32>
    %27 = tpu.matmul %15, %18, %cst_10 {dimension_numbers = #tpu.dot_dimension_numbers<[2], [2], [1], [1], [0, 0, 0, 1, 1, 1], [0], [0]>} : vector<4x8x8xbf16>, vector<4x8x8xbf16>, vector<4x8x8xf32> -> vector<4x8x8xf32>
    "tpu.trace_stop"() : () -> ()
    %28 = vector.broadcast %26 : vector<4x1x8xf32> to vector<4x8x8xf32>
    %29 = arith.addf %27, %28 : vector<4x8x8xf32>
    %cst_11 = arith.constant dense<0xFF800000> : vector<4x8xf32>
    %30 = vector.multi_reduction <maximumf>, %29, %cst_11 [2] : vector<4x8x8xf32> to vector<4x8xf32>
    %31 = vector.shape_cast %30 : vector<4x8xf32> to vector<4x8x1xf32>
    %32 = vector.broadcast %31 : vector<4x8x1xf32> to vector<4x8x8xf32>
    %33 = arith.subf %29, %32 : vector<4x8x8xf32>
    %34 = math.exp %33 : vector<4x8x8xf32>
    %cst_12 = arith.constant dense<0.000000e+00> : vector<4x8xf32>
    %35 = vector.multi_reduction <add>, %34, %cst_12 [2] : vector<4x8x8xf32> to vector<4x8xf32>
    %36 = vector.shape_cast %35 : vector<4x8xf32> to vector<4x8x1xf32>
    %37 = arith.truncf %34 : vector<4x8x8xf32> to vector<4x8x8xbf16>
    "tpu.trace_start"() <{level = 10 : i32, message = "bqk,bkd->bqd"}> : () -> ()
    %cst_13 = arith.constant dense<0.000000e+00> : vector<4x8x8xf32>
    %38 = tpu.matmul %37, %21, %cst_13 {dimension_numbers = #tpu.dot_dimension_numbers<[2], [1], [1], [2], [0, 0, 0, 1, 1, 2], [0], [0]>} : vector<4x8x8xbf16>, vector<4x8x8xbf16>, vector<4x8x8xf32> -> vector<4x8x8xf32>
    "tpu.trace_stop"() : () -> ()
    %39 = tpu.reciprocal %36 : vector<4x8x1xf32> -> vector<4x8x1xf32>
    %40 = vector.broadcast %39 : vector<4x8x1xf32> to vector<4x8x8xf32>
    %41 = arith.mulf %38, %40 : vector<4x8x8xf32>
    %42 = tpu.transpose %41, [1, 0, 2] : vector<4x8x8xf32> -> vector<8x4x8xf32>
    %43 = vector.shape_cast %42 : vector<8x4x8xf32> to vector<8x32xf32>
    %44 = arith.truncf %43 : vector<8x32xf32> to vector<8x32xbf16>
    %c0_14 = arith.constant 0 : index
    %c0_15 = arith.constant 0 : index
    %45 = vector.load %arg5[%c0_14, %c0_15] : memref<32x32xbf16, #tpu.memory_space<vmem>>, vector<32x32xbf16>
    %cst_16 = arith.constant dense<0.000000e+00> : vector<8x32xf32>
    %46 = tpu.matmul %44, %45, %cst_16 {dimension_numbers = #tpu.dot_dimension_numbers<[1], [0], [0], [1], [0, 0, 1, 1], [], []>} : vector<8x32xbf16>, vector<32x32xbf16>, vector<8x32xf32> -> vector<8x32xf32>
    %c0_17 = arith.constant 0 : index
    %c0_18 = arith.constant 0 : index
    %47 = vector.load %arg6[%c0_17, %c0_18] : memref<1x32xf32, #tpu.memory_space<vmem>>, vector<1x32xf32>
    %48 = vector.broadcast %47 : vector<1x32xf32> to vector<8x32xf32>
    %49 = arith.addf %46, %48 : vector<8x32xf32>
    %50 = arith.addf %49, %1 : vector<8x32xf32>
    %c0_19 = arith.constant 0 : index
    %c0_20 = arith.constant 0 : index
    %51 = vector.load %arg11[%c0_19, %c0_20] : memref<1x32xf32, #tpu.memory_space<vmem>>, vector<1x32xf32>
    %c0_21 = arith.constant 0 : index
    %c0_22 = arith.constant 0 : index
    %52 = vector.load %arg12[%c0_21, %c0_22] : memref<1x32xf32, #tpu.memory_space<vmem>>, vector<1x32xf32>
    %cst_23 = arith.constant dense<0.000000e+00> : vector<8xf32>
    %53 = vector.multi_reduction <add>, %50, %cst_23 [1] : vector<8x32xf32> to vector<8xf32>
    %54 = vector.shape_cast %53 : vector<8xf32> to vector<8x1xf32>
    %cst_24 = arith.constant 3.200000e+01 : f32
    %55 = vector.broadcast %cst_24 : f32 to vector<8x1xf32>
    %56 = arith.divf %54, %55 : vector<8x1xf32>
    %57 = vector.broadcast %56 : vector<8x1xf32> to vector<8x32xf32>
    %58 = arith.subf %50, %57 : vector<8x32xf32>
    %59 = arith.mulf %58, %58 : vector<8x32xf32>
    %cst_25 = arith.constant dense<0.000000e+00> : vector<8xf32>
    %60 = vector.multi_reduction <add>, %59, %cst_25 [1] : vector<8x32xf32> to vector<8xf32>
    %61 = vector.shape_cast %60 : vector<8xf32> to vector<8x1xf32>
    %cst_26 = arith.constant 3.200000e+01 : f32
    %62 = vector.broadcast %cst_26 : f32 to vector<8x1xf32>
    %63 = arith.divf %61, %62 : vector<8x1xf32>
    %64 = vector.broadcast %56 : vector<8x1xf32> to vector<8x32xf32>
    %65 = arith.subf %50, %64 : vector<8x32xf32>
    %cst_27 = arith.constant 9.99999974E-6 : f32
    %66 = vector.broadcast %cst_27 : f32 to vector<8x1xf32>
    %67 = arith.addf %63, %66 : vector<8x1xf32>
    %68 = math.rsqrt %67 : vector<8x1xf32>
    %69 = vector.broadcast %68 : vector<8x1xf32> to vector<8x32xf32>
    %70 = arith.mulf %65, %69 : vector<8x32xf32>
    %71 = vector.broadcast %51 : vector<1x32xf32> to vector<8x32xf32>
    %72 = arith.mulf %70, %71 : vector<8x32xf32>
    %73 = vector.broadcast %52 : vector<1x32xf32> to vector<8x32xf32>
    %74 = arith.addf %72, %73 : vector<8x32xf32>
    %75 = arith.truncf %74 : vector<8x32xf32> to vector<8x32xbf16>
    %c0_28 = arith.constant 0 : index
    %c0_29 = arith.constant 0 : index
    %76 = vector.load %arg7[%c0_28, %c0_29] : memref<32x32xbf16, #tpu.memory_space<vmem>>, vector<32x32xbf16>
    %cst_30 = arith.constant dense<0.000000e+00> : vector<8x32xf32>
    %77 = tpu.matmul %75, %76, %cst_30 {dimension_numbers = #tpu.dot_dimension_numbers<[1], [0], [0], [1], [0, 0, 1, 1], [], []>} : vector<8x32xbf16>, vector<32x32xbf16>, vector<8x32xf32> -> vector<8x32xf32>
    %c0_31 = arith.constant 0 : index
    %c0_32 = arith.constant 0 : index
    %78 = vector.load %arg8[%c0_31, %c0_32] : memref<1x32xf32, #tpu.memory_space<vmem>>, vector<1x32xf32>
    %79 = vector.broadcast %78 : vector<1x32xf32> to vector<8x32xf32>
    %80 = arith.addf %77, %79 : vector<8x32xf32>
    %cst_33 = arith.constant 0.000000e+00 : f32
    %81 = vector.broadcast %cst_33 : f32 to vector<8x32xf32>
    %82 = arith.maximumf %80, %81 : vector<8x32xf32>
    %83 = arith.truncf %82 : vector<8x32xf32> to vector<8x32xbf16>
    %c0_34 = arith.constant 0 : index
    %c0_35 = arith.constant 0 : index
    %84 = vector.load %arg9[%c0_34, %c0_35] : memref<32x32xbf16, #tpu.memory_space<vmem>>, vector<32x32xbf16>
    %cst_36 = arith.constant dense<0.000000e+00> : vector<8x32xf32>
    %85 = tpu.matmul %83, %84, %cst_36 {dimension_numbers = #tpu.dot_dimension_numbers<[1], [0], [0], [1], [0, 0, 1, 1], [], []>} : vector<8x32xbf16>, vector<32x32xbf16>, vector<8x32xf32> -> vector<8x32xf32>
    %c0_37 = arith.constant 0 : index
    %c0_38 = arith.constant 0 : index
    %86 = vector.load %arg10[%c0_37, %c0_38] : memref<1x32xf32, #tpu.memory_space<vmem>>, vector<1x32xf32>
    %87 = vector.broadcast %86 : vector<1x32xf32> to vector<8x32xf32>
    %88 = arith.addf %85, %87 : vector<8x32xf32>
    %89 = arith.addf %88, %74 : vector<8x32xf32>
    %c0_39 = arith.constant 0 : index
    %c0_40 = arith.constant 0 : index
    %90 = vector.load %arg13[%c0_39, %c0_40] : memref<1x32xf32, #tpu.memory_space<vmem>>, vector<1x32xf32>
    %c0_41 = arith.constant 0 : index
    %c0_42 = arith.constant 0 : index
    %91 = vector.load %arg14[%c0_41, %c0_42] : memref<1x32xf32, #tpu.memory_space<vmem>>, vector<1x32xf32>
    %cst_43 = arith.constant dense<0.000000e+00> : vector<8xf32>
    %92 = vector.multi_reduction <add>, %89, %cst_43 [1] : vector<8x32xf32> to vector<8xf32>
    %93 = vector.shape_cast %92 : vector<8xf32> to vector<8x1xf32>
    %cst_44 = arith.constant 3.200000e+01 : f32
    %94 = vector.broadcast %cst_44 : f32 to vector<8x1xf32>
    %95 = arith.divf %93, %94 : vector<8x1xf32>
    %96 = vector.broadcast %95 : vector<8x1xf32> to vector<8x32xf32>
    %97 = arith.subf %89, %96 : vector<8x32xf32>
    %98 = arith.mulf %97, %97 : vector<8x32xf32>
    %cst_45 = arith.constant dense<0.000000e+00> : vector<8xf32>
    %99 = vector.multi_reduction <add>, %98, %cst_45 [1] : vector<8x32xf32> to vector<8xf32>
    %100 = vector.shape_cast %99 : vector<8xf32> to vector<8x1xf32>
    %cst_46 = arith.constant 3.200000e+01 : f32
    %101 = vector.broadcast %cst_46 : f32 to vector<8x1xf32>
    %102 = arith.divf %100, %101 : vector<8x1xf32>
    %103 = vector.broadcast %95 : vector<8x1xf32> to vector<8x32xf32>
    %104 = arith.subf %89, %103 : vector<8x32xf32>
    %cst_47 = arith.constant 9.99999974E-6 : f32
    %105 = vector.broadcast %cst_47 : f32 to vector<8x1xf32>
    %106 = arith.addf %102, %105 : vector<8x1xf32>
    %107 = math.rsqrt %106 : vector<8x1xf32>
    %108 = vector.broadcast %107 : vector<8x1xf32> to vector<8x32xf32>
    %109 = arith.mulf %104, %108 : vector<8x32xf32>
    %110 = vector.broadcast %90 : vector<1x32xf32> to vector<8x32xf32>
    %111 = arith.mulf %109, %110 : vector<8x32xf32>
    %112 = vector.broadcast %91 : vector<1x32xf32> to vector<8x32xf32>
    %113 = arith.addf %111, %112 : vector<8x32xf32>
    %114 = vector.shape_cast %113 : vector<8x32xf32> to vector<1x8x32xf32>
    %c0_48 = arith.constant 0 : index
    %c0_49 = arith.constant 0 : index
    %c0_50 = arith.constant 0 : index
    %115 = vector.load %arg15[%c0_48, %c0_49, %c0_50] : memref<1x8x32xf32, #tpu.memory_space<vmem>>, vector<1x8x32xf32>
    tpu.vector_store %arg15[%c0_48, %c0_49, %c0_50], %114 {strides = array<i32>} : memref<1x8x32xf32, #tpu.memory_space<vmem>>, vector<1x8x32xf32>,
    return
  }
  func.func @transform_0(%arg0: i32) -> (i32, i32, i32) {
    %c0_i32 = arith.constant 0 : i32
    %c0_i32_0 = arith.constant 0 : i32
    %c0_i32_1 = arith.constant 0 : i32
    return %arg0, %c0_i32, %c0_i32_0 : i32, i32, i32
  }
  func.func @transform_1(%arg0: i32) -> (i32, i32, i32) {
    %c0_i32 = arith.constant 0 : i32
    %c0_i32_0 = arith.constant 0 : i32
    %c0_i32_1 = arith.constant 0 : i32
    return %arg0, %c0_i32, %c0_i32_0 : i32, i32, i32
  }
  func.func @transform_2(%arg0: i32) -> (i32, i32) {
    %c0_i32 = arith.constant 0 : i32
    %c0_i32_0 = arith.constant 0 : i32
    %c0_i32_1 = arith.constant 0 : i32
    return %c0_i32, %c0_i32_0 : i32, i32
  }
  func.func @transform_3(%arg0: i32) -> (i32, i32) {
    %c0_i32 = arith.constant 0 : i32
    %c0_i32_0 = arith.constant 0 : i32
    %c0_i32_1 = arith.constant 0 : i32
    return %c0_i32, %c0_i32_0 : i32, i32
  }
  func.func @transform_4(%arg0: i32) -> (i32, i32) {
    %c0_i32 = arith.constant 0 : i32
    %c0_i32_0 = arith.constant 0 : i32
    %c0_i32_1 = arith.constant 0 : i32
    return %c0_i32, %c0_i32_0 : i32, i32
  }
  func.func @transform_5(%arg0: i32) -> (i32, i32) {
    %c0_i32 = arith.constant 0 : i32
    %c0_i32_0 = arith.constant 0 : i32
    %c0_i32_1 = arith.constant 0 : i32
    return %c0_i32, %c0_i32_0 : i32, i32
  }
  func.func @transform_6(%arg0: i32) -> (i32, i32) {
    %c0_i32 = arith.constant 0 : i32
    %c0_i32_0 = arith.constant 0 : i32
    %c0_i32_1 = arith.constant 0 : i32
    return %c0_i32, %c0_i32_0 : i32, i32
  }
  func.func @transform_7(%arg0: i32) -> (i32, i32) {
    %c0_i32 = arith.constant 0 : i32
    %c0_i32_0 = arith.constant 0 : i32
    %c0_i32_1 = arith.constant 0 : i32
    return %c0_i32, %c0_i32_0 : i32, i32
  }
  func.func @transform_8(%arg0: i32) -> (i32, i32) {
    %c0_i32 = arith.constant 0 : i32
    %c0_i32_0 = arith.constant 0 : i32
    %c0_i32_1 = arith.constant 0 : i32
    return %c0_i32, %c0_i32_0 : i32, i32
  }
  func.func @transform_9(%arg0: i32) -> (i32, i32) {
    %c0_i32 = arith.constant 0 : i32
    %c0_i32_0 = arith.constant 0 : i32
    %c0_i32_1 = arith.constant 0 : i32
    return %c0_i32, %c0_i32_0 : i32, i32
  }
  func.func @transform_10(%arg0: i32) -> (i32, i32) {
    %c0_i32 = arith.constant 0 : i32
    %c0_i32_0 = arith.constant 0 : i32
    %c0_i32_1 = arith.constant 0 : i32
    return %c0_i32, %c0_i32_0 : i32, i32
  }
  func.func @transform_11(%arg0: i32) -> (i32, i32) {
    %c0_i32 = arith.constant 0 : i32
    %c0_i32_0 = arith.constant 0 : i32
    %c0_i32_1 = arith.constant 0 : i32
    return %c0_i32, %c0_i32_0 : i32, i32
  }
  func.func @transform_12(%arg0: i32) -> (i32, i32) {
    %c0_i32 = arith.constant 0 : i32
    %c0_i32_0 = arith.constant 0 : i32
    %c0_i32_1 = arith.constant 0 : i32
    return %c0_i32, %c0_i32_0 : i32, i32
  }
  func.func @transform_13(%arg0: i32) -> (i32, i32) {
    %c0_i32 = arith.constant 0 : i32
    %c0_i32_0 = arith.constant 0 : i32
    %c0_i32_1 = arith.constant 0 : i32
    return %c0_i32, %c0_i32_0 : i32, i32
  }
  func.func @transform_14(%arg0: i32) -> (i32, i32, i32) {
    %c0_i32 = arith.constant 0 : i32
    %c0_i32_0 = arith.constant 0 : i32
    %c0_i32_1 = arith.constant 0 : i32
    return %arg0, %c0_i32, %c0_i32_0 : i32, i32, i32
  }
}

</mosaic_0001>

<llo_original>
// kernel: tpu_custom_call.1
$region0: #{tpu_custom_call.1}
  #allocation0 [shape = 'u32[]', space=smem, size = 0x4, offset = 0x4, fixed_abs, tag = 'smem constant byte address 0x4 - core index']
  #allocation1 [shape = 'u32[144,128]{1,0:T(1,128)}', space=vmem, size = 0x12000, scoped, tag = 'internal scratch']
  %s0 = inlined_call_operand.hbm [shape: f32[2,8,32], index: 0, kind: input, shape index: {}]
  %s1 = inlined_call_operand.vmem [shape: f32[2,1,8], index: 1, kind: input, shape index: {}]
  %s2 = inlined_call_operand.hbm [shape: bf16[32,96], index: 2, kind: input, shape index: {}]
  %s3 = inlined_call_operand.vmem [shape: f32[1,96], index: 3, kind: input, shape index: {}]
  %s4 = inlined_call_operand.hbm [shape: bf16[32,32], index: 4, kind: input, shape index: {}]
  %s5 = inlined_call_operand.vmem [shape: f32[1,32], index: 5, kind: input, shape index: {}]
  %s6 = inlined_call_operand.vmem [shape: bf16[32,32], index: 6, kind: input, shape index: {}]
  %s7 = inlined_call_operand.vmem [shape: f32[1,32], index: 7, kind: input, shape index: {}]
  %s8 = inlined_call_operand.hbm [shape: bf16[32,32], index: 8, kind: input, shape index: {}]
  %s9 = inlined_call_operand.vmem [shape: f32[1,32], index: 9, kind: input, shape index: {}]
  %s10 = inlined_call_operand.vmem [shape: f32[1,32], index: 10, kind: input, shape index: {}]
  %s11 = inlined_call_operand.vmem [shape: f32[1,32], index: 11, kind: input, shape index: {}]
  %s12 = inlined_call_operand.vmem [shape: f32[1,32], index: 12, kind: input, shape index: {}]
  %s13 = inlined_call_operand.vmem [shape: f32[1,32], index: 13, kind: input, shape index: {}]
  %s14 = inlined_call_operand.hbm [shape: f32[2,8,32], index: 14, kind: output, shape index: {}]
  %s15 = sld [smem:[#allocation0]]
  $region105: #{tpu_custom_call.1} parent=0
    _
  %s17 = ssub.s32 1, %s15
  %s18 = scalar_select 0, %s17, %s15
  $region1: #{tpu_custom_call.1} parent=0
    #allocation2 [shape = 'u8[8192]{0}', space=vmem, size = 0x2000, scoped, tag = 'input window, operand 0']
    #allocation3 [shape = 's32[2]{0}', space=sflag, size = 0x8, scoped, tag = 'scoped memory for tpu_custom_call.1']
    #allocation4 [shape = 's32[2]{0}', space=sflag, size = 0x8, scoped, tag = 'scoped memory for tpu_custom_call.1']
    #allocation5 [shape = 'u8[8192]{0}', space=vmem, size = 0x2000, scoped, tag = 'input window, operand 2, single buffered']
    #allocation6 [shape = 's32[1]{0}', space=sflag, size = 0x4, scoped, tag = 'scoped memory for tpu_custom_call.1']
    #allocation7 [shape = 'u8[8192]{0}', space=vmem, size = 0x2000, scoped, tag = 'input window, operand 4, single buffered']
    #allocation8 [shape = 'u8[8192]{0}', space=vmem, size = 0x2000, scoped, tag = 'input window, operand 8, single buffered']
    #allocation9 [shape = 's32[1]{0}', space=sflag, size = 0x4, scoped, tag = 'scoped memory for tpu_custom_call.1']
    #allocation10 [shape = 'u8[8192]{0}', space=vmem, size = 0x2000, scoped, tag = 'output window, operand 0']
    %19 = vsyncpa [#allocation3], 0
    %s20 = scalar_lea.sflag [#allocation3], 1
    %21 = vsyncpa %s20, 0
    %22 = vsyncpa [#allocation6], 0
    %23 = vsyncpa [#allocation9], 0
    %24 = vsyncpa [#allocation4], 0
    %s25 = scalar_lea.sflag [#allocation4], 1
    %26 = vsyncpa %s25, 0
    loop: start=0, step=1, limit=4
    $region2: #{tpu_custom_call.1} parent=1 // loop_pre_header
      _
    $region3: #{tpu_custom_call.1} parent=1 // loop_header
      %s28 = sphi 0, %s32
      %p29 = scmp.ge.s32.totalorder %s28, 4
      %s38 = sphi 0, %s40
      %s41 = sphi 0, %s38
      %s42 = sphi 0, %s41
      %s58 = sphi 0, %s42
      %s64 = sphi 0, %s66
      %s67 = sphi 0, %s64
      %s68 = sphi 0, %s67
      %s84 = sphi 0, %s68
      %s88 = sphi 0, %s88
      %s90 = sphi 0, %s88
      %s91 = sphi 0, %s90
      %s105 = sphi 0, %s91
      %s109 = sphi 0, %s109
      %s111 = sphi 0, %s109
      %s112 = sphi 0, %s111
      %s126 = sphi 0, %s112
      %s130 = sphi 0, %s130
      %s132 = sphi 0, %s130
      %s133 = sphi 0, %s132
      %s147 = sphi 0, %s133
      %s151 = sphi 0, %s151
      %s153 = sphi 0, %s151
      %s154 = sphi 0, %s153
      %s168 = sphi 0, %s154
      %s172 = sphi 0, %s172
      %s174 = sphi 0, %s172
      %s175 = sphi 0, %s174
      %s189 = sphi 0, %s175
      %s193 = sphi 0, %s193
      %s195 = sphi 0, %s193
      %s196 = sphi 0, %s195
      %s210 = sphi 0, %s196
      %s214 = sphi 0, %s214
      %s216 = sphi 0, %s214
      %s217 = sphi 0, %s216
      %s231 = sphi 0, %s217
      %s235 = sphi 0, %s235
      %s237 = sphi 0, %s235
      %s238 = sphi 0, %s237
      %s252 = sphi 0, %s238
      %s256 = sphi 0, %s256
      %s258 = sphi 0, %s256
      %s259 = sphi 0, %s258
      %s273 = sphi 0, %s259
      %s277 = sphi 0, %s277
      %s279 = sphi 0, %s277
      %s280 = sphi 0, %s279
      %s294 = sphi 0, %s280
      %s298 = sphi 0, %s298
      %s300 = sphi 0, %s298
      %s301 = sphi 0, %s300
      %s315 = sphi 0, %s301
      %s319 = sphi 0, %s319
      %s321 = sphi 0, %s319
      %s322 = sphi 0, %s321
      %s336 = sphi 0, %s322
      %s342 = sphi 0, %s344
      %s345 = sphi 0, %s342
      %s346 = sphi 0, %s345
      %s362 = sphi 0, %s346
    $region4: #{tpu_custom_call.1} parent=1 // loop_header_branch
      %31 = sbr.rel (%p29) target = $region8
    $region5: #{tpu_custom_call.1} parent=1 // loop_body
      %s33 = ssub.s32 %s28, 1
      %s34 = ssub.s32 %s28, 2
      %s35 = sadd.s32 %s28, 1
      %s36 = ssub.s32 %s28, %s35
      %p37 = scmp.eq.s32.totalorder %s36, 0
      %s39 = sadd.s32 %s38, 1
      %s40 = scalar_select %p37, %s38, %s39
      %p43 = pneg %p37
      %p44 = scmp.eq.s32.totalorder %s28, 1
      %p45 = por %p43, %p44
      %p46 = scmp.ne.s32.totalorder %s38, %s41
      %p47 = scmp.eq.s32.totalorder %s28, 0
      %p48 = por %p46, %p47
      %p49 = scmp.ne.s32.totalorder %s38, %s41
      %p50 = scmp.eq.s32.totalorder %s33, 1
      %p51 = por %p49, %p50
      %p52 = scmp.ne.s32.totalorder %s41, %s42
      %p53 = scmp.eq.s32.totalorder %s33, 0
      %p54 = por %p52, %p53
      %p55 = scmp.ne.s32.totalorder %s41, %s42
      %p56 = scmp.eq.s32.totalorder %s34, 1
      %p57 = por %p55, %p56
      %p59 = scmp.ne.s32.totalorder %s42, %s58
      %p60 = scmp.eq.s32.totalorder %s34, 0
      %p61 = por %p59, %p60
      %s62 = ssub.s32 %s28, %s35
      %p63 = scmp.eq.s32.totalorder %s62, 0
      %s65 = sadd.s32 %s64, 1
      %s66 = scalar_select %p63, %s64, %s65
      %p69 = pneg %p63
      %p70 = scmp.eq.s32.totalorder %s28, 1
      %p71 = por %p69, %p70
      %p72 = scmp.ne.s32.totalorder %s64, %s67
      %p73 = scmp.eq.s32.totalorder %s28, 0
      %p74 = por %p72, %p73
      %p75 = scmp.ne.s32.totalorder %s64, %s67
      %p76 = scmp.eq.s32.totalorder %s33, 1
      %p77 = por %p75, %p76
      %p78 = scmp.ne.s32.totalorder %s67, %s68
      %p79 = scmp.eq.s32.totalorder %s33, 0
      %p80 = por %p78, %p79
      %p81 = scmp.ne.s32.totalorder %s67, %s68
      %p82 = scmp.eq.s32.totalorder %s34, 1
      %p83 = por %p81, %p82
      %p85 = scmp.ne.s32.totalorder %s68, %s84
      %p86 = scmp.eq.s32.totalorder %s34, 0
      %p87 = por %p85, %p86
      %s89 = sadd.s32 %s88, 1
      %p92 = scmp.eq.s32.totalorder %s28, 1
      %p93 = scmp.ne.s32.totalorder %s88, %s90
      %p94 = scmp.eq.s32.totalorder %s28, 0
      %p95 = por %p93, %p94
      %p96 = scmp.ne.s32.totalorder %s88, %s90
      %p97 = scmp.eq.s32.totalorder %s33, 1
      %p98 = por %p96, %p97
      %p99 = scmp.ne.s32.totalorder %s90, %s91
      %p100 = scmp.eq.s32.totalorder %s33, 0
      %p101 = por %p99, %p100
      %p102 = scmp.ne.s32.totalorder %s90, %s91
      %p103 = scmp.eq.s32.totalorder %s34, 1
      %p104 = por %p102, %p103
      %p106 = scmp.ne.s32.totalorder %s91, %s105
      %p107 = scmp.eq.s32.totalorder %s34, 0
      %p108 = por %p106, %p107
      %s110 = sadd.s32 %s109, 1
      %p113 = scmp.eq.s32.totalorder %s28, 1
      %p114 = scmp.ne.s32.totalorder %s109, %s111
      %p115 = scmp.eq.s32.totalorder %s28, 0
      %p116 = por %p114, %p115
      %p117 = scmp.ne.s32.totalorder %s109, %s111
      %p118 = scmp.eq.s32.totalorder %s33, 1
      %p119 = por %p117, %p118
      %p120 = scmp.ne.s32.totalorder %s111, %s112
      %p121 = scmp.eq.s32.totalorder %s33, 0
      %p122 = por %p120, %p121
      %p123 = scmp.ne.s32.totalorder %s111, %s112
      %p124 = scmp.eq.s32.totalorder %s34, 1
      %p125 = por %p123, %p124
      %p127 = scmp.ne.s32.totalorder %s112, %s126
      %p128 = scmp.eq.s32.totalorder %s34, 0
      %p129 = por %p127, %p128
      %s131 = sadd.s32 %s130, 1
      %p134 = scmp.eq.s32.totalorder %s28, 1
      %p135 = scmp.ne.s32.totalorder %s130, %s132
      %p136 = scmp.eq.s32.totalorder %s28, 0
      %p137 = por %p135, %p136
      %p138 = scmp.ne.s32.totalorder %s130, %s132
      %p139 = scmp.eq.s32.totalorder %s33, 1
      %p140 = por %p138, %p139
      %p141 = scmp.ne.s32.totalorder %s132, %s133
      %p142 = scmp.eq.s32.totalorder %s33, 0
      %p143 = por %p141, %p142
      %p144 = scmp.ne.s32.totalorder %s132, %s133
      %p145 = scmp.eq.s32.totalorder %s34, 1
      %p146 = por %p144, %p145
      %p148 = scmp.ne.s32.totalorder %s133, %s147
      %p149 = scmp.eq.s32.totalorder %s34, 0
      %p150 = por %p148, %p149
      %s152 = sadd.s32 %s151, 1
      %p155 = scmp.eq.s32.totalorder %s28, 1
      %p156 = scmp.ne.s32.totalorder %s151, %s153
      %p157 = scmp.eq.s32.totalorder %s28, 0
      %p158 = por %p156, %p157
      %p159 = scmp.ne.s32.totalorder %s151, %s153
      %p160 = scmp.eq.s32.totalorder %s33, 1
      %p161 = por %p159, %p160
      %p162 = scmp.ne.s32.totalorder %s153, %s154
      %p163 = scmp.eq.s32.totalorder %s33, 0
      %p164 = por %p162, %p163
      %p165 = scmp.ne.s32.totalorder %s153, %s154
      %p166 = scmp.eq.s32.totalorder %s34, 1
      %p167 = por %p165, %p166
      %p169 = scmp.ne.s32.totalorder %s154, %s168
      %p170 = scmp.eq.s32.totalorder %s34, 0
      %p171 = por %p169, %p170
      %s173 = sadd.s32 %s172, 1
      %p176 = scmp.eq.s32.totalorder %s28, 1
      %p177 = scmp.ne.s32.totalorder %s172, %s174
      %p178 = scmp.eq.s32.totalorder %s28, 0
      %p179 = por %p177, %p178
      %p180 = scmp.ne.s32.totalorder %s172, %s174
      %p181 = scmp.eq.s32.totalorder %s33, 1
      %p182 = por %p180, %p181
      %p183 = scmp.ne.s32.totalorder %s174, %s175
      %p184 = scmp.eq.s32.totalorder %s33, 0
      %p185 = por %p183, %p184
      %p186 = scmp.ne.s32.totalorder %s174, %s175
      %p187 = scmp.eq.s32.totalorder %s34, 1
      %p188 = por %p186, %p187
      %p190 = scmp.ne.s32.totalorder %s175, %s189
      %p191 = scmp.eq.s32.totalorder %s34, 0
      %p192 = por %p190, %p191
      %s194 = sadd.s32 %s193, 1
      %p197 = scmp.eq.s32.totalorder %s28, 1
      %p198 = scmp.ne.s32.totalorder %s193, %s195
      %p199 = scmp.eq.s32.totalorder %s28, 0
      %p200 = por %p198, %p199
      %p201 = scmp.ne.s32.totalorder %s193, %s195
      %p202 = scmp.eq.s32.totalorder %s33, 1
      %p203 = por %p201, %p202
      %p204 = scmp.ne.s32.totalorder %s195, %s196
      %p205 = scmp.eq.s32.totalorder %s33, 0
      %p206 = por %p204, %p205
      %p207 = scmp.ne.s32.totalorder %s195, %s196
      %p208 = scmp.eq.s32.totalorder %s34, 1
      %p209 = por %p207, %p208
      %p211 = scmp.ne.s32.totalorder %s196, %s210
      %p212 = scmp.eq.s32.totalorder %s34, 0
      %p213 = por %p211, %p212
      %s215 = sadd.s32 %s214, 1
      %p218 = scmp.eq.s32.totalorder %s28, 1
      %p219 = scmp.ne.s32.totalorder %s214, %s216
      %p220 = scmp.eq.s32.totalorder %s28, 0
      %p221 = por %p219, %p220
      %p222 = scmp.ne.s32.totalorder %s214, %s216
      %p223 = scmp.eq.s32.totalorder %s33, 1
      %p224 = por %p222, %p223
      %p225 = scmp.ne.s32.totalorder %s216, %s217
      %p226 = scmp.eq.s32.totalorder %s33, 0
      %p227 = por %p225, %p226
      %p228 = scmp.ne.s32.totalorder %s216, %s217
      %p229 = scmp.eq.s32.totalorder %s34, 1
      %p230 = por %p228, %p229
      %p232 = scmp.ne.s32.totalorder %s217, %s231
      %p233 = scmp.eq.s32.totalorder %s34, 0
      %p234 = por %p232, %p233
      %s236 = sadd.s32 %s235, 1
      %p239 = scmp.eq.s32.totalorder %s28, 1
      %p240 = scmp.ne.s32.totalorder %s235, %s237
      %p241 = scmp.eq.s32.totalorder %s28, 0
      %p242 = por %p240, %p241
      %p243 = scmp.ne.s32.totalorder %s235, %s237
      %p244 = scmp.eq.s32.totalorder %s33, 1
      %p245 = por %p243, %p244
      %p246 = scmp.ne.s32.totalorder %s237, %s238
      %p247 = scmp.eq.s32.totalorder %s33, 0
      %p248 = por %p246, %p247
      %p249 = scmp.ne.s32.totalorder %s237, %s238
      %p250 = scmp.eq.s32.totalorder %s34, 1
      %p251 = por %p249, %p250
      %p253 = scmp.ne.s32.totalorder %s238, %s252
      %p254 = scmp.eq.s32.totalorder %s34, 0
      %p255 = por %p253, %p254
      %s257 = sadd.s32 %s256, 1
      %p260 = scmp.eq.s32.totalorder %s28, 1
      %p261 = scmp.ne.s32.totalorder %s256, %s258
      %p262 = scmp.eq.s32.totalorder %s28, 0
      %p263 = por %p261, %p262
      %p264 = scmp.ne.s32.totalorder %s256, %s258
      %p265 = scmp.eq.s32.totalorder %s33, 1
      %p266 = por %p264, %p265
      %p267 = scmp.ne.s32.totalorder %s258, %s259
      %p268 = scmp.eq.s32.totalorder %s33, 0
      %p269 = por %p267, %p268
      %p270 = scmp.ne.s32.totalorder %s258, %s259
      %p271 = scmp.eq.s32.totalorder %s34, 1
      %p272 = por %p270, %p271
      %p274 = scmp.ne.s32.totalorder %s259, %s273
      %p275 = scmp.eq.s32.totalorder %s34, 0
      %p276 = por %p274, %p275
      %s278 = sadd.s32 %s277, 1
      %p281 = scmp.eq.s32.totalorder %s28, 1
      %p282 = scmp.ne.s32.totalorder %s277, %s279
      %p283 = scmp.eq.s32.totalorder %s28, 0
      %p284 = por %p282, %p283
      %p285 = scmp.ne.s32.totalorder %s277, %s279
      %p286 = scmp.eq.s32.totalorder %s33, 1
      %p287 = por %p285, %p286
      %p288 = scmp.ne.s32.totalorder %s279, %s280
      %p289 = scmp.eq.s32.totalorder %s33, 0
      %p290 = por %p288, %p289
      %p291 = scmp.ne.s32.totalorder %s279, %s280
      %p292 = scmp.eq.s32.totalorder %s34, 1
      %p293 = por %p291, %p292
      %p295 = scmp.ne.s32.totalorder %s280, %s294
      %p296 = scmp.eq.s32.totalorder %s34, 0
      %p297 = por %p295, %p296
      %s299 = sadd.s32 %s298, 1
      %p302 = scmp.eq.s32.totalorder %s28, 1
      %p303 = scmp.ne.s32.totalorder %s298, %s300
      %p304 = scmp.eq.s32.totalorder %s28, 0
      %p305 = por %p303, %p304
      %p306 = scmp.ne.s32.totalorder %s298, %s300
      %p307 = scmp.eq.s32.totalorder %s33, 1
      %p308 = por %p306, %p307
      %p309 = scmp.ne.s32.totalorder %s300, %s301
      %p310 = scmp.eq.s32.totalorder %s33, 0
      %p311 = por %p309, %p310
      %p312 = scmp.ne.s32.totalorder %s300, %s301
      %p313 = scmp.eq.s32.totalorder %s34, 1
      %p314 = por %p312, %p313
      %p316 = scmp.ne.s32.totalorder %s301, %s315
      %p317 = scmp.eq.s32.totalorder %s34, 0
      %p318 = por %p316, %p317
      %s320 = sadd.s32 %s319, 1
      %p323 = scmp.eq.s32.totalorder %s28, 1
      %p324 = scmp.ne.s32.totalorder %s319, %s321
      %p325 = scmp.eq.s32.totalorder %s28, 0
      %p326 = por %p324, %p325
      %p327 = scmp.ne.s32.totalorder %s319, %s321
      %p328 = scmp.eq.s32.totalorder %s33, 1
      %p329 = por %p327, %p328
      %p330 = scmp.ne.s32.totalorder %s321, %s322
      %p331 = scmp.eq.s32.totalorder %s33, 0
      %p332 = por %p330, %p331
      %p333 = scmp.ne.s32.totalorder %s321, %s322
      %p334 = scmp.eq.s32.totalorder %s34, 1
      %p335 = por %p333, %p334
      %p337 = scmp.ne.s32.totalorder %s322, %s336
      %p338 = scmp.eq.s32.totalorder %s34, 0
      %p339 = por %p337, %p338
      %s340 = ssub.s32 %s28, %s35
      %p341 = scmp.eq.s32.totalorder %s340, 0
      %s343 = sadd.s32 %s342, 1
      %s344 = scalar_select %p341, %s342, %s343
      %p347 = pneg %p341
      %p348 = scmp.eq.s32.totalorder %s28, 1
      %p349 = por %p347, %p348
      %p350 = scmp.ne.s32.totalorder %s342, %s345
      %p351 = scmp.eq.s32.totalorder %s28, 0
      %p352 = por %p350, %p351
      %p353 = scmp.ne.s32.totalorder %s342, %s345
      %p354 = scmp.eq.s32.totalorder %s33, 1
      %p355 = por %p353, %p354
      %p356 = scmp.ne.s32.totalorder %s345, %s346
      %p357 = scmp.eq.s32.totalorder %s33, 0
      %p358 = por %p356, %p357
      %p359 = scmp.ne.s32.totalorder %s345, %s346
      %p360 = scmp.eq.s32.totalorder %s34, 1
      %p361 = por %p359, %p360
      %p363 = scmp.ne.s32.totalorder %s346, %s362
      %p364 = scmp.eq.s32.totalorder %s34, 0
      %p365 = por %p363, %p364
      %p366 = scmp.le.s32.totalorder 1, %s28
      %p367 = scmp.lt.s32.totalorder %s28, 3
      %p368 = pnand %p366, %p367
      %p369 = pneg %p368
      // Predicated region
      $region9: #{tpu_custom_call.1} parent=5 // pred_check
        _
      $region10: #{tpu_custom_call.1} parent=5 // pred_check_branch
        %371 = sbr.rel (%p368) target = $region12
      $region11: #{tpu_custom_call.1} parent=5 // pred_region
        %s372 = ssub.s32 %s28, 1
        // Predicated region
        $region13: #{tpu_custom_call.1} parent=11 // pred_check
          %p373 = pneg %p101
        $region14: #{tpu_custom_call.1} parent=11 // pred_check_branch
          %375 = sbr.rel (%p373) target = $region16
        $region15: #{tpu_custom_call.1} parent=11 // pred_region
          %s377 = ssub.s32 256, 256
          %378 = vsyncadd [#allocation6], %s377
          %s379 = sshll.u32 [#allocation5], 4
          %s380 = int_to_ptr.vmem [resolvable:$true] %s379
          %385 = dma.hbm_to_vmem [thread:$0]  %s2, 256, %s380, [#allocation6], 64, 64, 4
        $region16: #{tpu_custom_call.1} parent=11 // pred_fallthru
          _
        // Predicated region
        $region17: #{tpu_custom_call.1} parent=11 // pred_check
          %p386 = pneg %p122
        $region18: #{tpu_custom_call.1} parent=11 // pred_check_branch
          %388 = sbr.rel (%p386) target = $region20
        $region19: #{tpu_custom_call.1} parent=11 // pred_region
          _
        $region20: #{tpu_custom_call.1} parent=11 // pred_fallthru
          _
        // Predicated region
        $region21: #{tpu_custom_call.1} parent=11 // pred_check
          %p389 = pneg %p143
        $region22: #{tpu_custom_call.1} parent=11 // pred_check_branch
          %391 = sbr.rel (%p389) target = $region24
        $region23: #{tpu_custom_call.1} parent=11 // pred_region
          %s393 = ssub.s32 256, 256
          %394 = vsyncadd [#allocation6], %s393
          %s395 = sshll.u32 [#allocation7], 4
          %s396 = int_to_ptr.vmem [resolvable:$true] %s395
          %401 = dma.hbm_to_vmem [thread:$0]  %s4, 256, %s396, [#allocation6], 64, 64, 4
        $region24: #{tpu_custom_call.1} parent=11 // pred_fallthru
          _
        // Predicated region
        $region25: #{tpu_custom_call.1} parent=11 // pred_check
          %p402 = pneg %p164
        $region26: #{tpu_custom_call.1} parent=11 // pred_check_branch
          %404 = sbr.rel (%p402) target = $region28
        $region27: #{tpu_custom_call.1} parent=11 // pred_region
          _
        $region28: #{tpu_custom_call.1} parent=11 // pred_fallthru
          _
        // Predicated region
        $region29: #{tpu_custom_call.1} parent=11 // pred_check
          %p405 = pneg %p185
        $region30: #{tpu_custom_call.1} parent=11 // pred_check_branch
          %407 = sbr.rel (%p405) target = $region32
        $region31: #{tpu_custom_call.1} parent=11 // pred_region
          _
        $region32: #{tpu_custom_call.1} parent=11 // pred_fallthru
          _
        // Predicated region
        $region33: #{tpu_custom_call.1} parent=11 // pred_check
          %p408 = pneg %p206
        $region34: #{tpu_custom_call.1} parent=11 // pred_check_branch
          %410 = sbr.rel (%p408) target = $region36
        $region35: #{tpu_custom_call.1} parent=11 // pred_region
          _
        $region36: #{tpu_custom_call.1} parent=11 // pred_fallthru
          _
        // Predicated region
        $region37: #{tpu_custom_call.1} parent=11 // pred_check
          %p411 = pneg %p227
        $region38: #{tpu_custom_call.1} parent=11 // pred_check_branch
          %413 = sbr.rel (%p411) target = $region40
        $region39: #{tpu_custom_call.1} parent=11 // pred_region
          %s415 = ssub.s32 256, 256
          %416 = vsyncadd [#allocation9], %s415
          %s417 = sshll.u32 [#allocation8], 4
          %s418 = int_to_ptr.vmem [resolvable:$true] %s417
          %423 = dma.hbm_to_vmem [thread:$0]  %s8, 256, %s418, [#allocation9], 64, 64, 4
        $region40: #{tpu_custom_call.1} parent=11 // pred_fallthru
          _
        // Predicated region
        $region41: #{tpu_custom_call.1} parent=11 // pred_check
          %p424 = pneg %p248
        $region42: #{tpu_custom_call.1} parent=11 // pred_check_branch
          %426 = sbr.rel (%p424) target = $region44
        $region43: #{tpu_custom_call.1} parent=11 // pred_region
          _
        $region44: #{tpu_custom_call.1} parent=11 // pred_fallthru
          _
        // Predicated region
        $region45: #{tpu_custom_call.1} parent=11 // pred_check
          %p427 = pneg %p269
        $region46: #{tpu_custom_call.1} parent=11 // pred_check_branch
          %429 = sbr.rel (%p427) target = $region48
        $region47: #{tpu_custom_call.1} parent=11 // pred_region
          _
        $region48: #{tpu_custom_call.1} parent=11 // pred_fallthru
          _
        // Predicated region
        $region49: #{tpu_custom_call.1} parent=11 // pred_check
          %p430 = pneg %p290
        $region50: #{tpu_custom_call.1} parent=11 // pred_check_branch
          %432 = sbr.rel (%p430) target = $region52
        $region51: #{tpu_custom_call.1} parent=11 // pred_region
          _
        $region52: #{tpu_custom_call.1} parent=11 // pred_fallthru
          _
        // Predicated region
        $region53: #{tpu_custom_call.1} parent=11 // pred_check
          %p433 = pneg %p311
        $region54: #{tpu_custom_call.1} parent=11 // pred_check_branch
          %435 = sbr.rel (%p433) target = $region56
        $region55: #{tpu_custom_call.1} parent=11 // pred_region
          _
        $region56: #{tpu_custom_call.1} parent=11 // pred_fallthru
          _
        // Predicated region
        $region57: #{tpu_custom_call.1} parent=11 // pred_check
          %p436 = pneg %p332
        $region58: #{tpu_custom_call.1} parent=11 // pred_check_branch
          %438 = sbr.rel (%p436) target = $region60
        $region59: #{tpu_custom_call.1} parent=11 // pred_region
          _
        $region60: #{tpu_custom_call.1} parent=11 // pred_fallthru
          _
      $region12: #{tpu_custom_call.1} parent=5 // pred_fallthru
        _
      %p439 = scmp.lt.s32.totalorder %s28, 2
      // Predicated region
      $region61: #{tpu_custom_call.1} parent=5 // pred_check
        %p440 = pneg %p439
      $region62: #{tpu_custom_call.1} parent=5 // pred_check_branch
        %442 = sbr.rel (%p440) target = $region64
      $region63: #{tpu_custom_call.1} parent=5 // pred_region
        // Predicated region
        $region65: #{tpu_custom_call.1} parent=63 // pred_check
          %p443 = pneg %p48
        $region66: #{tpu_custom_call.1} parent=63 // pred_check_branch
          %445 = sbr.rel (%p443) target = $region68
        $region67: #{tpu_custom_call.1} parent=63 // pred_region
          %s446 = sand.u32 %s38, 1
          %s447 = scalar_lea.sflag [#allocation3], %s446
          %s448 = sand.u32 %s38, 1
          %s449 = smul.addr %s448, 8
          %s450 = scalar_lea.vmem [#allocation2], %s449
          %s452 = ssub.s32 128, 128
          %453 = vsyncadd %s447, %s452
          %s454 = smul.addr %s28, 128
          %s455 = scalar_lea.hbm %s0, %s454
          %s457 = sshll.u32 %s450, 4
          %s458 = int_to_ptr.vmem [resolvable:$true] %s457
          %460 = dma.hbm_to_vmem [thread:$0]  %s455, 128, %s458, %s447
        $region68: #{tpu_custom_call.1} parent=63 // pred_fallthru
          _
        // Predicated region
        $region69: #{tpu_custom_call.1} parent=63 // pred_check
          %p461 = pneg %p74
        $region70: #{tpu_custom_call.1} parent=63 // pred_check_branch
          %463 = sbr.rel (%p461) target = $region72
        $region71: #{tpu_custom_call.1} parent=63 // pred_region
          %p464 = scmp.lt.s32.totalorder %s28, 1
          %s465 = scalar_select %p464, %s28, 1
          %s466 = scalar_lea.vmem %s1, %s465
        $region72: #{tpu_custom_call.1} parent=63 // pred_fallthru
          _
      $region64: #{tpu_custom_call.1} parent=5 // pred_fallthru
        _
      %p467 = scmp.le.s32.totalorder 1, %s28
      %p468 = scmp.lt.s32.totalorder %s28, 3
      %p469 = pnand %p467, %p468
      %p470 = pneg %p469
      // Predicated region
      $region73: #{tpu_custom_call.1} parent=5 // pred_check
        _
      $region74: #{tpu_custom_call.1} parent=5 // pred_check_branch
        %472 = sbr.rel (%p469) target = $region76
      $region75: #{tpu_custom_call.1} parent=5 // pred_region
        %s473 = ssub.s32 %s28, 1
        %s474 = sand.u32 %s41, 1
        %s475 = scalar_lea.sflag [#allocation3], %s474
        %s476 = sand.u32 %s41, 1
        %s477 = smul.addr %s476, 8
        %s478 = scalar_lea.vmem [#allocation2], %s477
        // Predicated region
        $region77: #{tpu_custom_call.1} parent=75 // pred_check
          %p479 = pneg %p54
        $region78: #{tpu_custom_call.1} parent=75 // pred_check_branch
          %481 = sbr.rel (%p479) target = $region80
        $region79: #{tpu_custom_call.1} parent=75 // pred_region
          %482 = dma.done %s475, 128
        $region80: #{tpu_custom_call.1} parent=75 // pred_fallthru
          _
        // Predicated region
        $region81: #{tpu_custom_call.1} parent=75 // pred_check
          %p483 = pneg %p101
        $region82: #{tpu_custom_call.1} parent=75 // pred_check_branch
          %485 = sbr.rel (%p483) target = $region84
        $region83: #{tpu_custom_call.1} parent=75 // pred_region
          %486 = dma.done [#allocation6], 256
        $region84: #{tpu_custom_call.1} parent=75 // pred_fallthru
          _
        // Predicated region
        $region85: #{tpu_custom_call.1} parent=75 // pred_check
          %p487 = pneg %p143
        $region86: #{tpu_custom_call.1} parent=75 // pred_check_branch
          %489 = sbr.rel (%p487) target = $region88
        $region87: #{tpu_custom_call.1} parent=75 // pred_region
          %490 = dma.done [#allocation6], 256
        $region88: #{tpu_custom_call.1} parent=75 // pred_fallthru
          _
        // Predicated region
        $region89: #{tpu_custom_call.1} parent=75 // pred_check
          %p491 = pneg %p227
        $region90: #{tpu_custom_call.1} parent=75 // pred_check_branch
          %493 = sbr.rel (%p491) target = $region92
        $region91: #{tpu_custom_call.1} parent=75 // pred_region
          %494 = dma.done [#allocation9], 256
        $region92: #{tpu_custom_call.1} parent=75 // pred_fallthru
          _
        %s495 = sand.u32 %s41, 1
        %s496 = scalar_lea.sflag [#allocation3], %s495
        %s497 = sand.u32 %s41, 1
        %s498 = smul.addr %s497, 8
        %s499 = scalar_lea.vmem [#allocation2], %s498
        %p500 = pneg %p54
        %p501 = pneg %p51
        %p502 = scmp.lt.s32.totalorder %s33, 1
        %s503 = scalar_select %p502, %s33, 1
        %s504 = scalar_lea.vmem %s1, %s503
        %p505 = pneg %p80
        %p506 = pneg %p77
        %p507 = pneg %p101
        %p508 = pneg %p98
        %p509 = pneg %p122
        %p510 = pneg %p119
        %p511 = pneg %p143
        %p512 = pneg %p140
        %p513 = pneg %p164
        %p514 = pneg %p161
        %p515 = pneg %p185
        %p516 = pneg %p182
        %p517 = pneg %p206
        %p518 = pneg %p203
        %p519 = pneg %p227
        %p520 = pneg %p224
        %p521 = pneg %p248
        %p522 = pneg %p245
        %p523 = pneg %p269
        %p524 = pneg %p266
        %p525 = pneg %p290
        %p526 = pneg %p287
        %p527 = pneg %p311
        %p528 = pneg %p308
        %p529 = pneg %p332
        %p530 = pneg %p329
        %p531 = pneg %p358
        %p532 = pneg %p355
        %s533 = sand.u32 %s345, 1
        %s534 = scalar_lea.sflag [#allocation4], %s533
        %s535 = sand.u32 %s345, 1
        %s536 = smul.addr %s535, 8
        %s537 = scalar_lea.vmem [#allocation10], %s536
        %p538 = scmp.lt.s32.totalorder %s33, 1
        %s539 = scalar_select %p538, %s33, 1
        %s540 = scalar_lea.vmem %s1, %s539
        %v542 = vld [vmem:[%s478] sm:$0xff]
        %v543 = vpack.c.bf16 %v542, %v542
        %v544 = vld [vmem:[#allocation5] sm:$0xf]
        %v545 = vld [vmem:[#allocation5 + $0x4] sm:$0xf]
        %v546 = vld [vmem:[#allocation5 + $0x8] sm:$0xf]
        %v547 = vld [vmem:[#allocation5 + $0xc] sm:$0xf]
        %v548 = vld [vmem:[%s3] sm:$0x1]
        %v550 = vlaneseq
        %v551 = vshrl.u32 %v550, 7
        %v552 = vsub.s32 0, %v551
        %v553 = vrot.slane %v548, %v552
        %v559 = vunpack.c.l.b16 %v544
        %v560 = vunpack.c.l.b16 %v545
        %v561 = vunpack.c.l.b16 %v546
        %v562 = vunpack.c.l.b16 %v547
        %v563 = vpack.c.b16 %v560, %v559
        %v564 = vpack.c.b16 %v562, %v561
        %vm567 = vcmask 261120
        %v569 = vsel %vm567, %v543, 0
        %571 = vmatprep.subr.bf16.mxu0 0
        %572 = vmatpush1.bf16.msra.mxu0 %v563
        %573 = vmatprep.subr.bf16.mxu0 0
        %574 = vmatpush1.bf16.msra.mxu0 %v564
        %575 = vmatprep.subr.bf16.mxu0 0
        %576 = vmatpush1.bf16.msra.mxu0 0
        %577 = vmatprep.subr.bf16.mxu0 0
        %578 = vmatpush1.bf16.msra.mxu0 0
        %579 = vmatprep.subr.bf16.mxu0 0
        %580 = vmatpush1.bf16.msra.mxu0 0
        %581 = vmatprep.subr.bf16.mxu0 0
        %582 = vmatpush1.bf16.msra.mxu0 0
        %583 = vmatprep.subr.bf16.mxu0 0
        %584 = vmatpush1.bf16.msra.mxu0 0
        %585 = vmatprep.subr.bf16.mxu0 0
        %586 = vmatpush1.bf16.msra.mxu0 0
        %587 = vmatprep.subr.bf16.mxu0 0
        %588 = vmatpush1.bf16.msra.mxu0 0
        %589 = vmatprep.subr.bf16.mxu0 0
        %590 = vmatpush1.bf16.msra.mxu0 0
        %591 = vmatprep.subr.bf16.mxu0 0
        %592 = vmatpush1.bf16.msra.mxu0 0
        %593 = vmatprep.subr.bf16.mxu0 0
        %594 = vmatpush1.bf16.msra.mxu0 0
        %595 = vmatprep.subr.bf16.mxu0 0
        %596 = vmatpush1.bf16.msra.mxu0 0
        %597 = vmatprep.subr.bf16.mxu0 0
        %598 = vmatpush1.bf16.msra.mxu0 0
        %599 = vmatprep.subr.bf16.mxu0 0
        %600 = vmatpush1.bf16.msra.mxu0 0
        %601 = vmatprep.subr.bf16.mxu0 0
        %602 = vmatpush1.bf16.msra.mxu0 0
        %603 = vmatprep.mubr.bf16.mxu0 0
        %604 = vmatmul.mubr.bf16.gmra.mrb[0].mxu0 %v569
        %v605 = vpop.f32.mrb[0].mxu0
        %v606 = vadd.f32 %v553, %v605
        %v607 = vpop.f32.mrb[0].mxu0
        %v608 = vpop.f32.mrb[0].mxu0
        %v609 = vpop.f32.mrb[0].mxu0
        %610 = vdwg.mxu0
        %v611 = vmul.f32 %v606, 0.35355338
        %613 = vrot.lane.b32.xlu0 %v611, 120
        %v614 = vpop.permute.xlu0 %613
        %616 = vrot.lane.b32.xlu0 %v611, 112
        %v617 = vpop.permute.xlu0 %616
        %619 = vrot.lane.b32.xlu0 %v611, 104
        %v620 = vpop.permute.xlu0 %619
        %v622 = vcombine.low %v611, %v617
        %v623 = vcombine.high %v611, %v617
        %v625 = vunpack.c.l.s4 1983009808
        %v626 = vunpack.c.0.s8 %v625
        %v627 = vlaneseq
        %v628 = vshrl.u32 %v627, 7
        %v629 = vsub.s32 %v626, %v628
        %v630 = vrot.slane %v622, %v629
        %v632 = vunpack.c.l.s4 1983009808
        %v633 = vunpack.c.0.s8 %v632
        %v634 = vlaneseq
        %v635 = vshrl.u32 %v634, 7
        %v636 = vsub.s32 %v633, %v635
        %v637 = vrot.slane %v623, %v636
        %v638 = vcombine.low %v614, %v620
        %v639 = vcombine.high %v614, %v620
        %v641 = vunpack.c.l.s4 1983009808
        %v642 = vunpack.c.0.s8 %v641
        %v643 = vlaneseq
        %v644 = vshrl.u32 %v643, 7
        %v645 = vsub.s32 %v642, %v644
        %v646 = vrot.slane %v638, %v645
        %v648 = vunpack.c.l.s4 1983009808
        %v649 = vunpack.c.0.s8 %v648
        %v650 = vlaneseq
        %v651 = vshrl.u32 %v650, 7
        %v652 = vsub.s32 %v649, %v651
        %v653 = vrot.slane %v639, %v652
        %v654 = vcombine.low %v630, %v646
        %v655 = vcombine.high %v630, %v646
        %v657 = vunpack.c.l.s4 1934713408
        %v658 = vunpack.c.0.s8 %v657
        %v659 = vlaneseq
        %v660 = vshrl.u32 %v659, 7
        %v661 = vsub.s32 %v658, %v660
        %v662 = vrot.slane %v654, %v661
        %v664 = vunpack.c.l.s4 1934713408
        %v665 = vunpack.c.0.s8 %v664
        %v666 = vlaneseq
        %v667 = vshrl.u32 %v666, 7
        %v668 = vsub.s32 %v665, %v667
        %v669 = vrot.slane %v655, %v668
        %v670 = vcombine.low %v637, %v653
        %v671 = vcombine.high %v637, %v653
        %v673 = vunpack.c.l.s4 1934713408
        %v674 = vunpack.c.0.s8 %v673
        %v675 = vlaneseq
        %v676 = vshrl.u32 %v675, 7
        %v677 = vsub.s32 %v674, %v676
        %v678 = vrot.slane %v670, %v677
        %v680 = vunpack.c.l.s4 1934713408
        %v681 = vunpack.c.0.s8 %v680
        %v682 = vlaneseq
        %v683 = vshrl.u32 %v682, 7
        %v684 = vsub.s32 %v681, %v683
        %v685 = vrot.slane %v671, %v684
        %v686 = vcombine.high %v662, 0.0
        %v687 = vcombine.high %v669, 0.0
        %v688 = vcombine.high %v678, 0.0
        %v689 = vcombine.high %v685, 0.0
        %v690 = vcombine.low %v662, %v669
        %v692 = vunpack.c.l.s4 1983009808
        %v693 = vunpack.c.0.s8 %v692
        %v694 = vlaneseq
        %v695 = vshrl.u32 %v694, 7
        %v696 = vsub.s32 %v693, %v695
        %v697 = vrot.slane %v690, %v696
        %v698 = vcombine.low %v686, %v687
        %v700 = vunpack.c.l.s4 1983009808
        %v701 = vunpack.c.0.s8 %v700
        %v702 = vlaneseq
        %v703 = vshrl.u32 %v702, 7
        %v704 = vsub.s32 %v701, %v703
        %v705 = vrot.slane %v698, %v704
        %v706 = vcombine.low %v678, %v685
        %v708 = vunpack.c.l.s4 1983009808
        %v709 = vunpack.c.0.s8 %v708
        %v710 = vlaneseq
        %v711 = vshrl.u32 %v710, 7
        %v712 = vsub.s32 %v709, %v711
        %v713 = vrot.slane %v706, %v712
        %v714 = vcombine.low %v688, %v689
        %v716 = vunpack.c.l.s4 1983009808
        %v717 = vunpack.c.0.s8 %v716
        %v718 = vlaneseq
        %v719 = vshrl.u32 %v718, 7
        %v720 = vsub.s32 %v717, %v719
        %v721 = vrot.slane %v714, %v720
        %v722 = vcombine.low %v697, %v705
        %v723 = vcombine.high %v697, %v705
        %v725 = vunpack.c.l.s4 1934713408
        %v726 = vunpack.c.0.s8 %v725
        %v727 = vlaneseq
        %v728 = vshrl.u32 %v727, 7
        %v729 = vsub.s32 %v726, %v728
        %v730 = vrot.slane %v722, %v729
        %v732 = vunpack.c.l.s4 1934713408
        %v733 = vunpack.c.0.s8 %v732
        %v734 = vlaneseq
        %v735 = vshrl.u32 %v734, 7
        %v736 = vsub.s32 %v733, %v735
        %v737 = vrot.slane %v723, %v736
        %v738 = vcombine.low %v713, %v721
        %v739 = vcombine.high %v713, %v721
        %v741 = vunpack.c.l.s4 1934713408
        %v742 = vunpack.c.0.s8 %v741
        %v743 = vlaneseq
        %v744 = vshrl.u32 %v743, 7
        %v745 = vsub.s32 %v742, %v744
        %v746 = vrot.slane %v738, %v745
        %v748 = vunpack.c.l.s4 1934713408
        %v749 = vunpack.c.0.s8 %v748
        %v750 = vlaneseq
        %v751 = vshrl.u32 %v750, 7
        %v752 = vsub.s32 %v749, %v751
        %v753 = vrot.slane %v739, %v752
        %v754 = vcombine.low %v730, %v746
        %v755 = vcombine.high %v730, %v746
        %v756 = vcombine.low %v737, %v753
        %v757 = vcombine.high %v737, %v753
        %v758 = vpack.c.bf16 %v754, %v754
        %v759 = vpack.c.bf16 %v755, %v755
        %v760 = vpack.c.bf16 %v756, %v756
        %v761 = vpack.c.bf16 %v757, %v757
        %763 = vrot.lane.b32.xlu0 %v606, 120
        %v764 = vpop.permute.xlu0 %763
        %765 = vrot.lane.b32.xlu0 %v606, 112
        %v766 = vpop.permute.xlu0 %765
        %767 = vrot.lane.b32.xlu0 %v606, 104
        %v768 = vpop.permute.xlu0 %767
        %769 = vrot.lane.b32.xlu0 %v606, 96
        %v770 = vpop.permute.xlu0 %769
        %771 = vrot.lane.b32.xlu0 %v764, 96
        %v772 = vpop.permute.xlu0 %771
        %773 = vrot.lane.b32.xlu0 %v766, 96
        %v774 = vpop.permute.xlu0 %773
        %775 = vrot.lane.b32.xlu0 %v768, 96
        %v776 = vpop.permute.xlu0 %775
        %v781 = vcombine.low %v770, %v774
        %v782 = vcombine.high %v770, %v774
        %v784 = vunpack.c.l.s4 1983009808
        %v785 = vunpack.c.0.s8 %v784
        %v786 = vlaneseq
        %v787 = vshrl.u32 %v786, 7
        %v788 = vsub.s32 %v785, %v787
        %v789 = vrot.slane %v781, %v788
        %v791 = vunpack.c.l.s4 1983009808
        %v792 = vunpack.c.0.s8 %v791
        %v793 = vlaneseq
        %v794 = vshrl.u32 %v793, 7
        %v795 = vsub.s32 %v792, %v794
        %v796 = vrot.slane %v782, %v795
        %v797 = vcombine.low %v772, %v776
        %v798 = vcombine.high %v772, %v776
        %v800 = vunpack.c.l.s4 1983009808
        %v801 = vunpack.c.0.s8 %v800
        %v802 = vlaneseq
        %v803 = vshrl.u32 %v802, 7
        %v804 = vsub.s32 %v801, %v803
        %v805 = vrot.slane %v797, %v804
        %v807 = vunpack.c.l.s4 1983009808
        %v808 = vunpack.c.0.s8 %v807
        %v809 = vlaneseq
        %v810 = vshrl.u32 %v809, 7
        %v811 = vsub.s32 %v808, %v810
        %v812 = vrot.slane %v798, %v811
        %v813 = vcombine.low %v789, %v805
        %v814 = vcombine.high %v789, %v805
        %v816 = vunpack.c.l.s4 1934713408
        %v817 = vunpack.c.0.s8 %v816
        %v818 = vlaneseq
        %v819 = vshrl.u32 %v818, 7
        %v820 = vsub.s32 %v817, %v819
        %v821 = vrot.slane %v813, %v820
        %v823 = vunpack.c.l.s4 1934713408
        %v824 = vunpack.c.0.s8 %v823
        %v825 = vlaneseq
        %v826 = vshrl.u32 %v825, 7
        %v827 = vsub.s32 %v824, %v826
        %v828 = vrot.slane %v814, %v827
        %v829 = vcombine.low %v796, %v812
        %v830 = vcombine.high %v796, %v812
        %v832 = vunpack.c.l.s4 1934713408
        %v833 = vunpack.c.0.s8 %v832
        %v834 = vlaneseq
        %v835 = vshrl.u32 %v834, 7
        %v836 = vsub.s32 %v833, %v835
        %v837 = vrot.slane %v829, %v836
        %v839 = vunpack.c.l.s4 1934713408
        %v840 = vunpack.c.0.s8 %v839
        %v841 = vlaneseq
        %v842 = vshrl.u32 %v841, 7
        %v843 = vsub.s32 %v840, %v842
        %v844 = vrot.slane %v830, %v843
        %v845 = vcombine.high %v821, 0.0
        %v846 = vcombine.high %v828, 0.0
        %v847 = vcombine.high %v837, 0.0
        %v848 = vcombine.high %v844, 0.0
        %v849 = vcombine.low %v821, %v828
        %v851 = vunpack.c.l.s4 1983009808
        %v852 = vunpack.c.0.s8 %v851
        %v853 = vlaneseq
        %v854 = vshrl.u32 %v853, 7
        %v855 = vsub.s32 %v852, %v854
        %v856 = vrot.slane %v849, %v855
        %v857 = vcombine.low %v845, %v846
        %v859 = vunpack.c.l.s4 1983009808
        %v860 = vunpack.c.0.s8 %v859
        %v861 = vlaneseq
        %v862 = vshrl.u32 %v861, 7
        %v863 = vsub.s32 %v860, %v862
        %v864 = vrot.slane %v857, %v863
        %v865 = vcombine.low %v837, %v844
        %v867 = vunpack.c.l.s4 1983009808
        %v868 = vunpack.c.0.s8 %v867
        %v869 = vlaneseq
        %v870 = vshrl.u32 %v869, 7
        %v871 = vsub.s32 %v868, %v870
        %v872 = vrot.slane %v865, %v871
        %v873 = vcombine.low %v847, %v848
        %v875 = vunpack.c.l.s4 1983009808
        %v876 = vunpack.c.0.s8 %v875
        %v877 = vlaneseq
        %v878 = vshrl.u32 %v877, 7
        %v879 = vsub.s32 %v876, %v878
        %v880 = vrot.slane %v873, %v879
        %v881 = vcombine.low %v856, %v864
        %v882 = vcombine.high %v856, %v864
        %v884 = vunpack.c.l.s4 1934713408
        %v885 = vunpack.c.0.s8 %v884
        %v886 = vlaneseq
        %v887 = vshrl.u32 %v886, 7
        %v888 = vsub.s32 %v885, %v887
        %v889 = vrot.slane %v881, %v888
        %v891 = vunpack.c.l.s4 1934713408
        %v892 = vunpack.c.0.s8 %v891
        %v893 = vlaneseq
        %v894 = vshrl.u32 %v893, 7
        %v895 = vsub.s32 %v892, %v894
        %v896 = vrot.slane %v882, %v895
        %v897 = vcombine.low %v872, %v880
        %v898 = vcombine.high %v872, %v880
        %v900 = vunpack.c.l.s4 1934713408
        %v901 = vunpack.c.0.s8 %v900
        %v902 = vlaneseq
        %v903 = vshrl.u32 %v902, 7
        %v904 = vsub.s32 %v901, %v903
        %v905 = vrot.slane %v897, %v904
        %v907 = vunpack.c.l.s4 1934713408
        %v908 = vunpack.c.0.s8 %v907
        %v909 = vlaneseq
        %v910 = vshrl.u32 %v909, 7
        %v911 = vsub.s32 %v908, %v910
        %v912 = vrot.slane %v898, %v911
        %v913 = vcombine.low %v889, %v905
        %v914 = vcombine.high %v889, %v905
        %v915 = vcombine.low %v896, %v912
        %v916 = vcombine.high %v896, %v912
        %v917 = vpack.c.bf16 %v913, %v913
        %v918 = vpack.c.bf16 %v914, %v914
        %v919 = vpack.c.bf16 %v915, %v915
        %v920 = vpack.c.bf16 %v916, %v916
        %921 = vrot.lane.b32.xlu0 %v606, 64
        %v922 = vpop.permute.xlu0 %921
        %923 = vrot.lane.b32.xlu0 %v764, 64
        %v924 = vpop.permute.xlu0 %923
        %925 = vrot.lane.b32.xlu0 %v766, 64
        %v926 = vpop.permute.xlu0 %925
        %927 = vrot.lane.b32.xlu0 %v768, 64
        %v928 = vpop.permute.xlu0 %927
        %v933 = vcombine.low %v922, %v926
        %v934 = vcombine.high %v922, %v926
        %v936 = vunpack.c.l.s4 1983009808
        %v937 = vunpack.c.0.s8 %v936
        %v938 = vlaneseq
        %v939 = vshrl.u32 %v938, 7
        %v940 = vsub.s32 %v937, %v939
        %v941 = vrot.slane %v933, %v940
        %v943 = vunpack.c.l.s4 1983009808
        %v944 = vunpack.c.0.s8 %v943
        %v945 = vlaneseq
        %v946 = vshrl.u32 %v945, 7
        %v947 = vsub.s32 %v944, %v946
        %v948 = vrot.slane %v934, %v947
        %v949 = vcombine.low %v924, %v928
        %v950 = vcombine.high %v924, %v928
        %v952 = vunpack.c.l.s4 1983009808
        %v953 = vunpack.c.0.s8 %v952
        %v954 = vlaneseq
        %v955 = vshrl.u32 %v954, 7
        %v956 = vsub.s32 %v953, %v955
        %v957 = vrot.slane %v949, %v956
        %v959 = vunpack.c.l.s4 1983009808
        %v960 = vunpack.c.0.s8 %v959
        %v961 = vlaneseq
        %v962 = vshrl.u32 %v961, 7
        %v963 = vsub.s32 %v960, %v962
        %v964 = vrot.slane %v950, %v963
        %v965 = vcombine.low %v941, %v957
        %v966 = vcombine.high %v941, %v957
        %v968 = vunpack.c.l.s4 1934713408
        %v969 = vunpack.c.0.s8 %v968
        %v970 = vlaneseq
        %v971 = vshrl.u32 %v970, 7
        %v972 = vsub.s32 %v969, %v971
        %v973 = vrot.slane %v965, %v972
        %v975 = vunpack.c.l.s4 1934713408
        %v976 = vunpack.c.0.s8 %v975
        %v977 = vlaneseq
        %v978 = vshrl.u32 %v977, 7
        %v979 = vsub.s32 %v976, %v978
        %v980 = vrot.slane %v966, %v979
        %v981 = vcombine.low %v948, %v964
        %v982 = vcombine.high %v948, %v964
        %v984 = vunpack.c.l.s4 1934713408
        %v985 = vunpack.c.0.s8 %v984
        %v986 = vlaneseq
        %v987 = vshrl.u32 %v986, 7
        %v988 = vsub.s32 %v985, %v987
        %v989 = vrot.slane %v981, %v988
        %v991 = vunpack.c.l.s4 1934713408
        %v992 = vunpack.c.0.s8 %v991
        %v993 = vlaneseq
        %v994 = vshrl.u32 %v993, 7
        %v995 = vsub.s32 %v992, %v994
        %v996 = vrot.slane %v982, %v995
        %v997 = vcombine.high %v973, 0.0
        %v998 = vcombine.high %v980, 0.0
        %v999 = vcombine.high %v989, 0.0
        %v1000 = vcombine.high %v996, 0.0
        %v1001 = vcombine.low %v973, %v980
        %v1003 = vunpack.c.l.s4 1983009808
        %v1004 = vunpack.c.0.s8 %v1003
        %v1005 = vlaneseq
        %v1006 = vshrl.u32 %v1005, 7
        %v1007 = vsub.s32 %v1004, %v1006
        %v1008 = vrot.slane %v1001, %v1007
        %v1009 = vcombine.low %v997, %v998
        %v1011 = vunpack.c.l.s4 1983009808
        %v1012 = vunpack.c.0.s8 %v1011
        %v1013 = vlaneseq
        %v1014 = vshrl.u32 %v1013, 7
        %v1015 = vsub.s32 %v1012, %v1014
        %v1016 = vrot.slane %v1009, %v1015
        %v1017 = vcombine.low %v989, %v996
        %v1019 = vunpack.c.l.s4 1983009808
        %v1020 = vunpack.c.0.s8 %v1019
        %v1021 = vlaneseq
        %v1022 = vshrl.u32 %v1021, 7
        %v1023 = vsub.s32 %v1020, %v1022
        %v1024 = vrot.slane %v1017, %v1023
        %v1025 = vcombine.low %v999, %v1000
        %v1027 = vunpack.c.l.s4 1983009808
        %v1028 = vunpack.c.0.s8 %v1027
        %v1029 = vlaneseq
        %v1030 = vshrl.u32 %v1029, 7
        %v1031 = vsub.s32 %v1028, %v1030
        %v1032 = vrot.slane %v1025, %v1031
        %v1033 = vcombine.low %v1008, %v1016
        %v1034 = vcombine.high %v1008, %v1016
        %v1036 = vunpack.c.l.s4 1934713408
        %v1037 = vunpack.c.0.s8 %v1036
        %v1038 = vlaneseq
        %v1039 = vshrl.u32 %v1038, 7
        %v1040 = vsub.s32 %v1037, %v1039
        %v1041 = vrot.slane %v1033, %v1040
        %v1043 = vunpack.c.l.s4 1934713408
        %v1044 = vunpack.c.0.s8 %v1043
        %v1045 = vlaneseq
        %v1046 = vshrl.u32 %v1045, 7
        %v1047 = vsub.s32 %v1044, %v1046
        %v1048 = vrot.slane %v1034, %v1047
        %v1049 = vcombine.low %v1024, %v1032
        %v1050 = vcombine.high %v1024, %v1032
        %v1052 = vunpack.c.l.s4 1934713408
        %v1053 = vunpack.c.0.s8 %v1052
        %v1054 = vlaneseq
        %v1055 = vshrl.u32 %v1054, 7
        %v1056 = vsub.s32 %v1053, %v1055
        %v1057 = vrot.slane %v1049, %v1056
        %v1059 = vunpack.c.l.s4 1934713408
        %v1060 = vunpack.c.0.s8 %v1059
        %v1061 = vlaneseq
        %v1062 = vshrl.u32 %v1061, 7
        %v1063 = vsub.s32 %v1060, %v1062
        %v1064 = vrot.slane %v1050, %v1063
        %v1065 = vcombine.low %v1041, %v1057
        %v1066 = vcombine.high %v1041, %v1057
        %v1067 = vcombine.low %v1048, %v1064
        %v1068 = vcombine.high %v1048, %v1064
        %v1069 = vpack.c.bf16 %v1065, %v1065
        %v1070 = vpack.c.bf16 %v1066, %v1066
        %v1071 = vpack.c.bf16 %v1067, %v1067
        %v1072 = vpack.c.bf16 %v1068, %v1068
        %v1073 = vld [vmem:[%s540] sm:$0x1]
        %v1075 = vlaneseq
        %v1076 = vshrl.u32 %v1075, 7
        %v1077 = vsub.s32 0, %v1076
        %v1078 = vrot.slane %v1073, %v1077
        %vm1080 = vcmask 64512
        %v1082 = vsel %vm1080, %v758, 0
        %v1085 = vsel %vm1080, %v917, 0
        %1087 = vmatprep.subr.bf16.mxu0 0
        %1088 = vmatpush1.bf16.xpose.msra.mxu0 %v1085
        %1089 = vmatprep.subr.bf16.mxu0 0
        %1090 = vmatpush1.bf16.xpose.msra.mxu0 0
        %1091 = vmatprep.subr.bf16.mxu0 0
        %1092 = vmatpush1.bf16.xpose.msra.mxu0 0
        %1093 = vmatprep.subr.bf16.mxu0 0
        %1094 = vmatpush1.bf16.xpose.msra.mxu0 0
        %1095 = vmatprep.subr.bf16.mxu0 0
        %1096 = vmatpush1.bf16.xpose.msra.mxu0 0
        %1097 = vmatprep.subr.bf16.mxu0 0
        %1098 = vmatpush1.bf16.xpose.msra.mxu0 0
        %1099 = vmatprep.subr.bf16.mxu0 0
        %1100 = vmatpush1.bf16.xpose.msra.mxu0 0
        %1101 = vmatprep.subr.bf16.mxu0 0
        %1102 = vmatpush1.bf16.xpose.msra.mxu0 0
        %1103 = vmatprep.subr.bf16.mxu0 0
        %1104 = vmatpush1.bf16.xpose.msra.mxu0 0
        %1105 = vmatprep.subr.bf16.mxu0 0
        %1106 = vmatpush1.bf16.xpose.msra.mxu0 0
        %1107 = vmatprep.subr.bf16.mxu0 0
        %1108 = vmatpush1.bf16.xpose.msra.mxu0 0
        %1109 = vmatprep.subr.bf16.mxu0 0
        %1110 = vmatpush1.bf16.xpose.msra.mxu0 0
        %1111 = vmatprep.subr.bf16.mxu0 0
        %1112 = vmatpush1.bf16.xpose.msra.mxu0 0
        %1113 = vmatprep.subr.bf16.mxu0 0
        %1114 = vmatpush1.bf16.xpose.msra.mxu0 0
        %1115 = vmatprep.subr.bf16.mxu0 0
        %1116 = vmatpush1.bf16.xpose.msra.mxu0 0
        %1117 = vmatprep.subr.bf16.mxu0 0
        %1118 = vmatpush1.bf16.xpose.msra.mxu0 0
        %1119 = vmatprep.mubr.bf16.mxu0 0
        %1120 = vmatmul.mubr.bf16.gmra.mrb[0].mxu0 %v1082
        %v1121 = vpop.f32.mrb[0].mxu0
        %v1122 = vadd.f32 %v1078, %v1121
        %v1123 = vpop.f32.mrb[0].mxu0
        %v1124 = vpop.f32.mrb[0].mxu0
        %v1125 = vpop.f32.mrb[0].mxu0
        %1126 = vdwg.mxu0
        %v1128 = vsel %vm1080, %v759, 0
        %v1131 = vsel %vm1080, %v918, 0
        %1133 = vmatprep.subr.bf16.mxu0 0
        %1134 = vmatpush1.bf16.xpose.msra.mxu0 %v1131
        %1135 = vmatprep.subr.bf16.mxu0 0
        %1136 = vmatpush1.bf16.xpose.msra.mxu0 0
        %1137 = vmatprep.subr.bf16.mxu0 0
        %1138 = vmatpush1.bf16.xpose.msra.mxu0 0
        %1139 = vmatprep.subr.bf16.mxu0 0
        %1140 = vmatpush1.bf16.xpose.msra.mxu0 0
        %1141 = vmatprep.subr.bf16.mxu0 0
        %1142 = vmatpush1.bf16.xpose.msra.mxu0 0
        %1143 = vmatprep.subr.bf16.mxu0 0
        %1144 = vmatpush1.bf16.xpose.msra.mxu0 0
        %1145 = vmatprep.subr.bf16.mxu0 0
        %1146 = vmatpush1.bf16.xpose.msra.mxu0 0
        %1147 = vmatprep.subr.bf16.mxu0 0
        %1148 = vmatpush1.bf16.xpose.msra.mxu0 0
        %1149 = vmatprep.subr.bf16.mxu0 0
        %1150 = vmatpush1.bf16.xpose.msra.mxu0 0
        %1151 = vmatprep.subr.bf16.mxu0 0
        %1152 = vmatpush1.bf16.xpose.msra.mxu0 0
        %1153 = vmatprep.subr.bf16.mxu0 0
        %1154 = vmatpush1.bf16.xpose.msra.mxu0 0
        %1155 = vmatprep.subr.bf16.mxu0 0
        %1156 = vmatpush1.bf16.xpose.msra.mxu0 0
        %1157 = vmatprep.subr.bf16.mxu0 0
        %1158 = vmatpush1.bf16.xpose.msra.mxu0 0
        %1159 = vmatprep.subr.bf16.mxu0 0
        %1160 = vmatpush1.bf16.xpose.msra.mxu0 0
        %1161 = vmatprep.subr.bf16.mxu0 0
        %1162 = vmatpush1.bf16.xpose.msra.mxu0 0
        %1163 = vmatprep.subr.bf16.mxu0 0
        %1164 = vmatpush1.bf16.xpose.msra.mxu0 0
        %1165 = vmatprep.mubr.bf16.mxu0 0
        %1166 = vmatmul.mubr.bf16.gmra.mrb[0].mxu0 %v1128
        %v1167 = vpop.f32.mrb[0].mxu0
        %v1168 = vadd.f32 %v1078, %v1167
        %v1169 = vpop.f32.mrb[0].mxu0
        %v1170 = vpop.f32.mrb[0].mxu0
        %v1171 = vpop.f32.mrb[0].mxu0
        %1172 = vdwg.mxu0
        %v1174 = vsel %vm1080, %v760, 0
        %v1177 = vsel %vm1080, %v919, 0
        %1179 = vmatprep.subr.bf16.mxu0 0
        %1180 = vmatpush1.bf16.xpose.msra.mxu0 %v1177
        %1181 = vmatprep.subr.bf16.mxu0 0
        %1182 = vmatpush1.bf16.xpose.msra.mxu0 0
        %1183 = vmatprep.subr.bf16.mxu0 0
        %1184 = vmatpush1.bf16.xpose.msra.mxu0 0
        %1185 = vmatprep.subr.bf16.mxu0 0
        %1186 = vmatpush1.bf16.xpose.msra.mxu0 0
        %1187 = vmatprep.subr.bf16.mxu0 0
        %1188 = vmatpush1.bf16.xpose.msra.mxu0 0
        %1189 = vmatprep.subr.bf16.mxu0 0
        %1190 = vmatpush1.bf16.xpose.msra.mxu0 0
        %1191 = vmatprep.subr.bf16.mxu0 0
        %1192 = vmatpush1.bf16.xpose.msra.mxu0 0
        %1193 = vmatprep.subr.bf16.mxu0 0
        %1194 = vmatpush1.bf16.xpose.msra.mxu0 0
        %1195 = vmatprep.subr.bf16.mxu0 0
        %1196 = vmatpush1.bf16.xpose.msra.mxu0 0
        %1197 = vmatprep.subr.bf16.mxu0 0
        %1198 = vmatpush1.bf16.xpose.msra.mxu0 0
        %1199 = vmatprep.subr.bf16.mxu0 0
        %1200 = vmatpush1.bf16.xpose.msra.mxu0 0
        %1201 = vmatprep.subr.bf16.mxu0 0
        %1202 = vmatpush1.bf16.xpose.msra.mxu0 0
        %1203 = vmatprep.subr.bf16.mxu0 0
        %1204 = vmatpush1.bf16.xpose.msra.mxu0 0
        %1205 = vmatprep.subr.bf16.mxu0 0
        %1206 = vmatpush1.bf16.xpose.msra.mxu0 0
        %1207 = vmatprep.subr.bf16.mxu0 0
        %1208 = vmatpush1.bf16.xpose.msra.mxu0 0
        %1209 = vmatprep.subr.bf16.mxu0 0
        %1210 = vmatpush1.bf16.xpose.msra.mxu0 0
        %1211 = vmatprep.mubr.bf16.mxu0 0
        %1212 = vmatmul.mubr.bf16.gmra.mrb[0].mxu0 %v1174
        %v1213 = vpop.f32.mrb[0].mxu0
        %v1214 = vadd.f32 %v1078, %v1213
        %v1215 = vpop.f32.mrb[0].mxu0
        %v1216 = vpop.f32.mrb[0].mxu0
        %v1217 = vpop.f32.mrb[0].mxu0
        %1218 = vdwg.mxu0
        %v1220 = vsel %vm1080, %v761, 0
        %v1223 = vsel %vm1080, %v920, 0
        %1225 = vmatprep.subr.bf16.mxu0 0
        %1226 = vmatpush1.bf16.xpose.msra.mxu0 %v1223
        %1227 = vmatprep.subr.bf16.mxu0 0
        %1228 = vmatpush1.bf16.xpose.msra.mxu0 0
        %1229 = vmatprep.subr.bf16.mxu0 0
        %1230 = vmatpush1.bf16.xpose.msra.mxu0 0
        %1231 = vmatprep.subr.bf16.mxu0 0
        %1232 = vmatpush1.bf16.xpose.msra.mxu0 0
        %1233 = vmatprep.subr.bf16.mxu0 0
        %1234 = vmatpush1.bf16.xpose.msra.mxu0 0
        %1235 = vmatprep.subr.bf16.mxu0 0
        %1236 = vmatpush1.bf16.xpose.msra.mxu0 0
        %1237 = vmatprep.subr.bf16.mxu0 0
        %1238 = vmatpush1.bf16.xpose.msra.mxu0 0
        %1239 = vmatprep.subr.bf16.mxu0 0
        %1240 = vmatpush1.bf16.xpose.msra.mxu0 0
        %1241 = vmatprep.subr.bf16.mxu0 0
        %1242 = vmatpush1.bf16.xpose.msra.mxu0 0
        %1243 = vmatprep.subr.bf16.mxu0 0
        %1244 = vmatpush1.bf16.xpose.msra.mxu0 0
        %1245 = vmatprep.subr.bf16.mxu0 0
        %1246 = vmatpush1.bf16.xpose.msra.mxu0 0
        %1247 = vmatprep.subr.bf16.mxu0 0
        %1248 = vmatpush1.bf16.xpose.msra.mxu0 0
        %1249 = vmatprep.subr.bf16.mxu0 0
        %1250 = vmatpush1.bf16.xpose.msra.mxu0 0
        %1251 = vmatprep.subr.bf16.mxu0 0
        %1252 = vmatpush1.bf16.xpose.msra.mxu0 0
        %1253 = vmatprep.subr.bf16.mxu0 0
        %1254 = vmatpush1.bf16.xpose.msra.mxu0 0
        %1255 = vmatprep.subr.bf16.mxu0 0
        %1256 = vmatpush1.bf16.xpose.msra.mxu0 0
        %1257 = vmatprep.mubr.bf16.mxu0 0
        %1258 = vmatmul.mubr.bf16.gmra.mrb[0].mxu0 %v1220
        %v1259 = vpop.f32.mrb[0].mxu0
        %v1260 = vadd.f32 %v1078, %v1259
        %v1261 = vpop.f32.mrb[0].mxu0
        %v1262 = vpop.f32.mrb[0].mxu0
        %v1263 = vpop.f32.mrb[0].mxu0
        %1264 = vdwg.mxu0
        %v1265 = vsel %vm1080, %v1122, -inf
        %1266 = vmax.xlane.f32.xlu0 %v1265
        %v1267 = vpop.xlane.xlu0 %1266
        %v1268 = vsel %vm1080, %v1168, -inf
        %1269 = vmax.xlane.f32.xlu0 %v1268
        %v1270 = vpop.xlane.xlu0 %1269
        %v1271 = vsel %vm1080, %v1214, -inf
        %1272 = vmax.xlane.f32.xlu0 %v1271
        %v1273 = vpop.xlane.xlu0 %1272
        %v1274 = vsel %vm1080, %v1260, -inf
        %1275 = vmax.xlane.f32.xlu0 %v1274
        %v1276 = vpop.xlane.xlu0 %1275
        %v1277 = vsub.f32 %v1122, %v1267
        %v1278 = vsub.f32 %v1168, %v1270
        %v1279 = vsub.f32 %v1214, %v1273
        %v1280 = vsub.f32 %v1260, %v1276
        %v1281 = vmul.f32 %v1277, 1.442695
        %v1282 = vpow.pop %v1281
        %v1283 = vmul.f32 %v1278, 1.442695
        %v1284 = vpow.pop %v1283
        %v1285 = vmul.f32 %v1279, 1.442695
        %v1286 = vpow.pop %v1285
        %v1287 = vmul.f32 %v1280, 1.442695
        %v1288 = vpow.pop %v1287
        %v1289 = vsel %vm1080, %v1282, 0.0
        %1290 = vadd.xlane.f32.xlu0 %v1289
        %v1291 = vpop.xlane.xlu0 %1290
        %v1292 = vsel %vm1080, %v1284, 0.0
        %1293 = vadd.xlane.f32.xlu0 %v1292
        %v1294 = vpop.xlane.xlu0 %1293
        %v1295 = vsel %vm1080, %v1286, 0.0
        %1296 = vadd.xlane.f32.xlu0 %v1295
        %v1297 = vpop.xlane.xlu0 %1296
        %v1298 = vsel %vm1080, %v1288, 0.0
        %1299 = vadd.xlane.f32.xlu0 %v1298
        %v1300 = vpop.xlane.xlu0 %1299
        %v1301 = vpack.c.bf16 %v1282, %v1282
        %v1302 = vpack.c.bf16 %v1284, %v1284
        %v1303 = vpack.c.bf16 %v1286, %v1286
        %v1304 = vpack.c.bf16 %v1288, %v1288
        %v1306 = vsel %vm1080, %v1301, 0
        %vm1308 = vcmask 1043456
        %v1310 = vsel %vm1308, %v1069, 0
        %1312 = vmatprep.subr.bf16.mxu0 0
        %1313 = vmatpush1.bf16.msra.mxu0 %v1310
        %1314 = vmatprep.subr.bf16.mxu0 0
        %1315 = vmatpush1.bf16.msra.mxu0 0
        %1316 = vmatprep.subr.bf16.mxu0 0
        %1317 = vmatpush1.bf16.msra.mxu0 0
        %1318 = vmatprep.subr.bf16.mxu0 0
        %1319 = vmatpush1.bf16.msra.mxu0 0
        %1320 = vmatprep.subr.bf16.mxu0 0
        %1321 = vmatpush1.bf16.msra.mxu0 0
        %1322 = vmatprep.subr.bf16.mxu0 0
        %1323 = vmatpush1.bf16.msra.mxu0 0
        %1324 = vmatprep.subr.bf16.mxu0 0
        %1325 = vmatpush1.bf16.msra.mxu0 0
        %1326 = vmatprep.subr.bf16.mxu0 0
        %1327 = vmatpush1.bf16.msra.mxu0 0
        %1328 = vmatprep.subr.bf16.mxu0 0
        %1329 = vmatpush1.bf16.msra.mxu0 0
        %1330 = vmatprep.subr.bf16.mxu0 0
        %1331 = vmatpush1.bf16.msra.mxu0 0
        %1332 = vmatprep.subr.bf16.mxu0 0
        %1333 = vmatpush1.bf16.msra.mxu0 0
        %1334 = vmatprep.subr.bf16.mxu0 0
        %1335 = vmatpush1.bf16.msra.mxu0 0
        %1336 = vmatprep.subr.bf16.mxu0 0
        %1337 = vmatpush1.bf16.msra.mxu0 0
        %1338 = vmatprep.subr.bf16.mxu0 0
        %1339 = vmatpush1.bf16.msra.mxu0 0
        %1340 = vmatprep.subr.bf16.mxu0 0
        %1341 = vmatpush1.bf16.msra.mxu0 0
        %1342 = vmatprep.subr.bf16.mxu0 0
        %1343 = vmatpush1.bf16.msra.mxu0 0
        %1344 = vmatprep.mubr.bf16.mxu0 0
        %1345 = vmatmul.mubr.bf16.gmra.mrb[0].mxu0 %v1306
        %v1346 = vpop.f32.mrb[0].mxu0
        %v1347 = vadd.f32 0.0, %v1346
        %v1348 = vpop.f32.mrb[0].mxu0
        %v1349 = vpop.f32.mrb[0].mxu0
        %v1350 = vpop.f32.mrb[0].mxu0
        %1351 = vdwg.mxu0
        %v1353 = vsel %vm1080, %v1302, 0
        %v1356 = vsel %vm1308, %v1070, 0
        %1358 = vmatprep.subr.bf16.mxu0 0
        %1359 = vmatpush1.bf16.msra.mxu0 %v1356
        %1360 = vmatprep.subr.bf16.mxu0 0
        %1361 = vmatpush1.bf16.msra.mxu0 0
        %1362 = vmatprep.subr.bf16.mxu0 0
        %1363 = vmatpush1.bf16.msra.mxu0 0
        %1364 = vmatprep.subr.bf16.mxu0 0
        %1365 = vmatpush1.bf16.msra.mxu0 0
        %1366 = vmatprep.subr.bf16.mxu0 0
        %1367 = vmatpush1.bf16.msra.mxu0 0
        %1368 = vmatprep.subr.bf16.mxu0 0
        %1369 = vmatpush1.bf16.msra.mxu0 0
        %1370 = vmatprep.subr.bf16.mxu0 0
        %1371 = vmatpush1.bf16.msra.mxu0 0
        %1372 = vmatprep.subr.bf16.mxu0 0
        %1373 = vmatpush1.bf16.msra.mxu0 0
        %1374 = vmatprep.subr.bf16.mxu0 0
        %1375 = vmatpush1.bf16.msra.mxu0 0
        %1376 = vmatprep.subr.bf16.mxu0 0
        %1377 = vmatpush1.bf16.msra.mxu0 0
        %1378 = vmatprep.subr.bf16.mxu0 0
        %1379 = vmatpush1.bf16.msra.mxu0 0
        %1380 = vmatprep.subr.bf16.mxu0 0
        %1381 = vmatpush1.bf16.msra.mxu0 0
        %1382 = vmatprep.subr.bf16.mxu0 0
        %1383 = vmatpush1.bf16.msra.mxu0 0
        %1384 = vmatprep.subr.bf16.mxu0 0
        %1385 = vmatpush1.bf16.msra.mxu0 0
        %1386 = vmatprep.subr.bf16.mxu0 0
        %1387 = vmatpush1.bf16.msra.mxu0 0
        %1388 = vmatprep.subr.bf16.mxu0 0
        %1389 = vmatpush1.bf16.msra.mxu0 0
        %1390 = vmatprep.mubr.bf16.mxu0 0
        %1391 = vmatmul.mubr.bf16.gmra.mrb[0].mxu0 %v1353
        %v1392 = vpop.f32.mrb[0].mxu0
        %v1393 = vadd.f32 0.0, %v1392
        %v1394 = vpop.f32.mrb[0].mxu0
        %v1395 = vpop.f32.mrb[0].mxu0
        %v1396 = vpop.f32.mrb[0].mxu0
        %1397 = vdwg.mxu0
        %v1399 = vsel %vm1080, %v1303, 0
        %v1402 = vsel %vm1308, %v1071, 0
        %1404 = vmatprep.subr.bf16.mxu0 0
        %1405 = vmatpush1.bf16.msra.mxu0 %v1402
        %1406 = vmatprep.subr.bf16.mxu0 0
        %1407 = vmatpush1.bf16.msra.mxu0 0
        %1408 = vmatprep.subr.bf16.mxu0 0
        %1409 = vmatpush1.bf16.msra.mxu0 0
        %1410 = vmatprep.subr.bf16.mxu0 0
        %1411 = vmatpush1.bf16.msra.mxu0 0
        %1412 = vmatprep.subr.bf16.mxu0 0
        %1413 = vmatpush1.bf16.msra.mxu0 0
        %1414 = vmatprep.subr.bf16.mxu0 0
        %1415 = vmatpush1.bf16.msra.mxu0 0
        %1416 = vmatprep.subr.bf16.mxu0 0
        %1417 = vmatpush1.bf16.msra.mxu0 0
        %1418 = vmatprep.subr.bf16.mxu0 0
        %1419 = vmatpush1.bf16.msra.mxu0 0
        %1420 = vmatprep.subr.bf16.mxu0 0
        %1421 = vmatpush1.bf16.msra.mxu0 0
        %1422 = vmatprep.subr.bf16.mxu0 0
        %1423 = vmatpush1.bf16.msra.mxu0 0
        %1424 = vmatprep.subr.bf16.mxu0 0
        %1425 = vmatpush1.bf16.msra.mxu0 0
        %1426 = vmatprep.subr.bf16.mxu0 0
        %1427 = vmatpush1.bf16.msra.mxu0 0
        %1428 = vmatprep.subr.bf16.mxu0 0
        %1429 = vmatpush1.bf16.msra.mxu0 0
        %1430 = vmatprep.subr.bf16.mxu0 0
        %1431 = vmatpush1.bf16.msra.mxu0 0
        %1432 = vmatprep.subr.bf16.mxu0 0
        %1433 = vmatpush1.bf16.msra.mxu0 0
        %1434 = vmatprep.subr.bf16.mxu0 0
        %1435 = vmatpush1.bf16.msra.mxu0 0
        %1436 = vmatprep.mubr.bf16.mxu0 0
        %1437 = vmatmul.mubr.bf16.gmra.mrb[0].mxu0 %v1399
        %v1438 = vpop.f32.mrb[0].mxu0
        %v1439 = vadd.f32 0.0, %v1438
        %v1440 = vpop.f32.mrb[0].mxu0
        %v1441 = vpop.f32.mrb[0].mxu0
        %v1442 = vpop.f32.mrb[0].mxu0
        %1443 = vdwg.mxu0
        %v1445 = vsel %vm1080, %v1304, 0
        %v1448 = vsel %vm1308, %v1072, 0
        %1450 = vmatprep.subr.bf16.mxu0 0
        %1451 = vmatpush1.bf16.msra.mxu0 %v1448
        %1452 = vmatprep.subr.bf16.mxu0 0
        %1453 = vmatpush1.bf16.msra.mxu0 0
        %1454 = vmatprep.subr.bf16.mxu0 0
        %1455 = vmatpush1.bf16.msra.mxu0 0
        %1456 = vmatprep.subr.bf16.mxu0 0
        %1457 = vmatpush1.bf16.msra.mxu0 0
        %1458 = vmatprep.subr.bf16.mxu0 0
        %1459 = vmatpush1.bf16.msra.mxu0 0
        %1460 = vmatprep.subr.bf16.mxu0 0
        %1461 = vmatpush1.bf16.msra.mxu0 0
        %1462 = vmatprep.subr.bf16.mxu0 0
        %1463 = vmatpush1.bf16.msra.mxu0 0
        %1464 = vmatprep.subr.bf16.mxu0 0
        %1465 = vmatpush1.bf16.msra.mxu0 0
        %1466 = vmatprep.subr.bf16.mxu0 0
        %1467 = vmatpush1.bf16.msra.mxu0 0
        %1468 = vmatprep.subr.bf16.mxu0 0
        %1469 = vmatpush1.bf16.msra.mxu0 0
        %1470 = vmatprep.subr.bf16.mxu0 0
        %1471 = vmatpush1.bf16.msra.mxu0 0
        %1472 = vmatprep.subr.bf16.mxu0 0
        %1473 = vmatpush1.bf16.msra.mxu0 0
        %1474 = vmatprep.subr.bf16.mxu0 0
        %1475 = vmatpush1.bf16.msra.mxu0 0
        %1476 = vmatprep.subr.bf16.mxu0 0
        %1477 = vmatpush1.bf16.msra.mxu0 0
        %1478 = vmatprep.subr.bf16.mxu0 0
        %1479 = vmatpush1.bf16.msra.mxu0 0
        %1480 = vmatprep.subr.bf16.mxu0 0
        %1481 = vmatpush1.bf16.msra.mxu0 0
        %1482 = vmatprep.mubr.bf16.mxu0 0
        %1483 = vmatmul.mubr.bf16.gmra.mrb[0].mxu0 %v1445
        %v1484 = vpop.f32.mrb[0].mxu0
        %v1485 = vadd.f32 0.0, %v1484
        %v1486 = vpop.f32.mrb[0].mxu0
        %v1487 = vpop.f32.mrb[0].mxu0
        %v1488 = vpop.f32.mrb[0].mxu0
        %1489 = vdwg.mxu0
        %v1490 = vrcp.pop %v1291
        %v1491 = vrcp.pop %v1294
        %v1492 = vrcp.pop %v1297
        %v1493 = vrcp.pop %v1300
        %v1494 = vmul.f32 %v1347, %v1490
        %v1495 = vmul.f32 %v1393, %v1491
        %v1496 = vmul.f32 %v1439, %v1492
        %v1497 = vmul.f32 %v1485, %v1493
        %v1498 = vcombine.low %v1494, %v1496
        %v1499 = vcombine.high %v1494, %v1496
        %v1501 = vunpack.c.l.s4 1983009808
        %v1502 = vunpack.c.0.s8 %v1501
        %v1503 = vlaneseq
        %v1504 = vshrl.u32 %v1503, 7
        %v1505 = vsub.s32 %v1502, %v1504
        %v1506 = vrot.slane %v1498, %v1505
        %v1508 = vunpack.c.l.s4 1983009808
        %v1509 = vunpack.c.0.s8 %v1508
        %v1510 = vlaneseq
        %v1511 = vshrl.u32 %v1510, 7
        %v1512 = vsub.s32 %v1509, %v1511
        %v1513 = vrot.slane %v1499, %v1512
        %v1514 = vcombine.low %v1495, %v1497
        %v1515 = vcombine.high %v1495, %v1497
        %v1517 = vunpack.c.l.s4 1983009808
        %v1518 = vunpack.c.0.s8 %v1517
        %v1519 = vlaneseq
        %v1520 = vshrl.u32 %v1519, 7
        %v1521 = vsub.s32 %v1518, %v1520
        %v1522 = vrot.slane %v1514, %v1521
        %v1524 = vunpack.c.l.s4 1983009808
        %v1525 = vunpack.c.0.s8 %v1524
        %v1526 = vlaneseq
        %v1527 = vshrl.u32 %v1526, 7
        %v1528 = vsub.s32 %v1525, %v1527
        %v1529 = vrot.slane %v1515, %v1528
        %v1530 = vcombine.low %v1506, %v1522
        %v1531 = vcombine.high %v1506, %v1522
        %v1533 = vunpack.c.l.s4 1934713408
        %v1534 = vunpack.c.0.s8 %v1533
        %v1535 = vlaneseq
        %v1536 = vshrl.u32 %v1535, 7
        %v1537 = vsub.s32 %v1534, %v1536
        %v1538 = vrot.slane %v1530, %v1537
        %v1540 = vunpack.c.l.s4 1934713408
        %v1541 = vunpack.c.0.s8 %v1540
        %v1542 = vlaneseq
        %v1543 = vshrl.u32 %v1542, 7
        %v1544 = vsub.s32 %v1541, %v1543
        %v1545 = vrot.slane %v1531, %v1544
        %v1546 = vcombine.low %v1513, %v1529
        %v1547 = vcombine.high %v1513, %v1529
        %v1549 = vunpack.c.l.s4 1934713408
        %v1550 = vunpack.c.0.s8 %v1549
        %v1551 = vlaneseq
        %v1552 = vshrl.u32 %v1551, 7
        %v1553 = vsub.s32 %v1550, %v1552
        %v1554 = vrot.slane %v1546, %v1553
        %v1556 = vunpack.c.l.s4 1934713408
        %v1557 = vunpack.c.0.s8 %v1556
        %v1558 = vlaneseq
        %v1559 = vshrl.u32 %v1558, 7
        %v1560 = vsub.s32 %v1557, %v1559
        %v1561 = vrot.slane %v1547, %v1560
        %v1562 = vcombine.high %v1538, 0.0
        %v1563 = vcombine.high %v1545, 0.0
        %v1564 = vcombine.high %v1554, 0.0
        %v1565 = vcombine.high %v1561, 0.0
        %v1566 = vcombine.low %v1538, %v1545
        %v1568 = vunpack.c.l.s4 1983009808
        %v1569 = vunpack.c.0.s8 %v1568
        %v1570 = vlaneseq
        %v1571 = vshrl.u32 %v1570, 7
        %v1572 = vsub.s32 %v1569, %v1571
        %v1573 = vrot.slane %v1566, %v1572
        %v1574 = vcombine.low %v1562, %v1563
        %v1576 = vunpack.c.l.s4 1983009808
        %v1577 = vunpack.c.0.s8 %v1576
        %v1578 = vlaneseq
        %v1579 = vshrl.u32 %v1578, 7
        %v1580 = vsub.s32 %v1577, %v1579
        %v1581 = vrot.slane %v1574, %v1580
        %v1582 = vcombine.low %v1554, %v1561
        %v1584 = vunpack.c.l.s4 1983009808
        %v1585 = vunpack.c.0.s8 %v1584
        %v1586 = vlaneseq
        %v1587 = vshrl.u32 %v1586, 7
        %v1588 = vsub.s32 %v1585, %v1587
        %v1589 = vrot.slane %v1582, %v1588
        %v1590 = vcombine.low %v1564, %v1565
        %v1592 = vunpack.c.l.s4 1983009808
        %v1593 = vunpack.c.0.s8 %v1592
        %v1594 = vlaneseq
        %v1595 = vshrl.u32 %v1594, 7
        %v1596 = vsub.s32 %v1593, %v1595
        %v1597 = vrot.slane %v1590, %v1596
        %v1598 = vcombine.low %v1573, %v1581
        %v1599 = vcombine.high %v1573, %v1581
        %v1601 = vunpack.c.l.s4 1934713408
        %v1602 = vunpack.c.0.s8 %v1601
        %v1603 = vlaneseq
        %v1604 = vshrl.u32 %v1603, 7
        %v1605 = vsub.s32 %v1602, %v1604
        %v1606 = vrot.slane %v1598, %v1605
        %v1608 = vunpack.c.l.s4 1934713408
        %v1609 = vunpack.c.0.s8 %v1608
        %v1610 = vlaneseq
        %v1611 = vshrl.u32 %v1610, 7
        %v1612 = vsub.s32 %v1609, %v1611
        %v1613 = vrot.slane %v1599, %v1612
        %v1614 = vcombine.low %v1589, %v1597
        %v1615 = vcombine.high %v1589, %v1597
        %v1617 = vunpack.c.l.s4 1934713408
        %v1618 = vunpack.c.0.s8 %v1617
        %v1619 = vlaneseq
        %v1620 = vshrl.u32 %v1619, 7
        %v1621 = vsub.s32 %v1618, %v1620
        %v1622 = vrot.slane %v1614, %v1621
        %v1624 = vunpack.c.l.s4 1934713408
        %v1625 = vunpack.c.0.s8 %v1624
        %v1626 = vlaneseq
        %v1627 = vshrl.u32 %v1626, 7
        %v1628 = vsub.s32 %v1625, %v1627
        %v1629 = vrot.slane %v1615, %v1628
        %v1630 = vcombine.low %v1606, %v1622
        %v1631 = vcombine.high %v1606, %v1622
        %v1632 = vcombine.low %v1613, %v1629
        %v1633 = vcombine.high %v1613, %v1629
        %1635 = vrot.lane.b32.xlu0 %v1631, 8
        %v1636 = vpop.permute.xlu0 %1635
        %1639 = vrot.lane.b32.xlu0 %v1632, 16
        %v1640 = vpop.permute.xlu0 %1639
        %1643 = vrot.lane.b32.xlu0 %v1633, 24
        %v1644 = vpop.permute.xlu0 %1643
        %v1646 = vsel %vm1080, %v1630, %v1636
        %vm1647 = vcmask 130048
        %v1648 = vsel %vm1647, %v1646, %v1640
        %vm1649 = vcmask 195584
        %v1650 = vsel %vm1649, %v1648, %v1644
        %v1651 = vpack.c.bf16 %v1650, %v1650
        %v1652 = vld [vmem:[#allocation7] sm:$0xf]
        %v1653 = vld [vmem:[#allocation7 + $0x4] sm:$0xf]
        %v1654 = vld [vmem:[#allocation7 + $0x8] sm:$0xf]
        %v1655 = vld [vmem:[#allocation7 + $0xc] sm:$0xf]
        %v1656 = vld [vmem:[%s5] sm:$0x1]
        %v1658 = vlaneseq
        %v1659 = vshrl.u32 %v1658, 7
        %v1660 = vsub.s32 0, %v1659
        %v1661 = vrot.slane %v1656, %v1660
        %v1667 = vunpack.c.l.b16 %v1652
        %v1668 = vunpack.c.l.b16 %v1653
        %v1669 = vunpack.c.l.b16 %v1654
        %v1670 = vunpack.c.l.b16 %v1655
        %v1671 = vpack.c.b16 %v1668, %v1667
        %v1672 = vpack.c.b16 %v1670, %v1669
        %v1676 = vsel %vm567, %v1651, 0
        %1678 = vmatprep.subr.bf16.mxu0 0
        %1679 = vmatpush1.bf16.msra.mxu0 %v1671
        %1680 = vmatprep.subr.bf16.mxu0 0
        %1681 = vmatpush1.bf16.msra.mxu0 %v1672
        %1682 = vmatprep.subr.bf16.mxu0 0
        %1683 = vmatpush1.bf16.msra.mxu0 0
        %1684 = vmatprep.subr.bf16.mxu0 0
        %1685 = vmatpush1.bf16.msra.mxu0 0
        %1686 = vmatprep.subr.bf16.mxu0 0
        %1687 = vmatpush1.bf16.msra.mxu0 0
        %1688 = vmatprep.subr.bf16.mxu0 0
        %1689 = vmatpush1.bf16.msra.mxu0 0
        %1690 = vmatprep.subr.bf16.mxu0 0
        %1691 = vmatpush1.bf16.msra.mxu0 0
        %1692 = vmatprep.subr.bf16.mxu0 0
        %1693 = vmatpush1.bf16.msra.mxu0 0
        %1694 = vmatprep.subr.bf16.mxu0 0
        %1695 = vmatpush1.bf16.msra.mxu0 0
        %1696 = vmatprep.subr.bf16.mxu0 0
        %1697 = vmatpush1.bf16.msra.mxu0 0
        %1698 = vmatprep.subr.bf16.mxu0 0
        %1699 = vmatpush1.bf16.msra.mxu0 0
        %1700 = vmatprep.subr.bf16.mxu0 0
        %1701 = vmatpush1.bf16.msra.mxu0 0
        %1702 = vmatprep.subr.bf16.mxu0 0
        %1703 = vmatpush1.bf16.msra.mxu0 0
        %1704 = vmatprep.subr.bf16.mxu0 0
        %1705 = vmatpush1.bf16.msra.mxu0 0
        %1706 = vmatprep.subr.bf16.mxu0 0
        %1707 = vmatpush1.bf16.msra.mxu0 0
        %1708 = vmatprep.subr.bf16.mxu0 0
        %1709 = vmatpush1.bf16.msra.mxu0 0
        %1710 = vmatprep.mubr.bf16.mxu0 0
        %1711 = vmatmul.mubr.bf16.gmra.mrb[0].mxu0 %v1676
        %v1712 = vpop.f32.mrb[0].mxu0
        %v1713 = vadd.f32 %v1661, %v1712
        %v1714 = vpop.f32.mrb[0].mxu0
        %v1715 = vpop.f32.mrb[0].mxu0
        %v1716 = vpop.f32.mrb[0].mxu0
        %1717 = vdwg.mxu0
        %v1718 = vadd.f32 %v1713, %v542
        %v1719 = vld [vmem:[%s10] sm:$0x1]
        %v1720 = vld [vmem:[%s11] sm:$0x1]
        %v1721 = vsel %vm567, %v1718, 0.0
        %1722 = vadd.xlane.f32.xlu0 %v1721
        %v1723 = vpop.xlane.xlu0 %1722
        %v1724 = vrcp.pop 32.0
        %v1725 = vmul.f32 %v1723, %v1724
        %v1726 = vsub.f32 %v1718, %v1725
        %v1727 = vmul.f32 %v1726, %v1726
        %v1728 = vsel %vm567, %v1727, 0.0
        %1729 = vadd.xlane.f32.xlu0 %v1728
        %v1730 = vpop.xlane.xlu0 %1729
        %v1731 = vmul.f32 %v1730, %v1724
        %v1732 = vadd.f32 %v1731, 1e-05
        %v1733 = vrsqrt.pop %v1732
        %v1734 = vmul.f32 %v1726, %v1733
        %v1736 = vlaneseq
        %v1737 = vshrl.u32 %v1736, 7
        %v1738 = vsub.s32 0, %v1737
        %v1739 = vrot.slane %v1719, %v1738
        %v1741 = vmul.f32 %v1734, %v1739
        %v1743 = vlaneseq
        %v1744 = vshrl.u32 %v1743, 7
        %v1745 = vsub.s32 0, %v1744
        %v1746 = vrot.slane %v1720, %v1745
        %v1748 = vadd.f32 %v1741, %v1746
        %v1749 = vpack.c.bf16 %v1748, %v1748
        %v1750 = vld [vmem:[%s6] sm:$0xf]
        %v1751 = vld [vmem:[%s6 + $0x4] sm:$0xf]
        %v1752 = vld [vmem:[%s6 + $0x8] sm:$0xf]
        %v1753 = vld [vmem:[%s6 + $0xc] sm:$0xf]
        %v1754 = vld [vmem:[%s7] sm:$0x1]
        %v1756 = vlaneseq
        %v1757 = vshrl.u32 %v1756, 7
        %v1758 = vsub.s32 0, %v1757
        %v1759 = vrot.slane %v1754, %v1758
        %v1765 = vunpack.c.l.b16 %v1750
        %v1766 = vunpack.c.l.b16 %v1751
        %v1767 = vunpack.c.l.b16 %v1752
        %v1768 = vunpack.c.l.b16 %v1753
        %v1769 = vpack.c.b16 %v1766, %v1765
        %v1770 = vpack.c.b16 %v1768, %v1767
        %v1774 = vsel %vm567, %v1749, 0
        %1776 = vmatprep.subr.bf16.mxu0 0
        %1777 = vmatpush1.bf16.msra.mxu0 %v1769
        %1778 = vmatprep.subr.bf16.mxu0 0
        %1779 = vmatpush1.bf16.msra.mxu0 %v1770
        %1780 = vmatprep.subr.bf16.mxu0 0
        %1781 = vmatpush1.bf16.msra.mxu0 0
        %1782 = vmatprep.subr.bf16.mxu0 0
        %1783 = vmatpush1.bf16.msra.mxu0 0
        %1784 = vmatprep.subr.bf16.mxu0 0
        %1785 = vmatpush1.bf16.msra.mxu0 0
        %1786 = vmatprep.subr.bf16.mxu0 0
        %1787 = vmatpush1.bf16.msra.mxu0 0
        %1788 = vmatprep.subr.bf16.mxu0 0
        %1789 = vmatpush1.bf16.msra.mxu0 0
        %1790 = vmatprep.subr.bf16.mxu0 0
        %1791 = vmatpush1.bf16.msra.mxu0 0
        %1792 = vmatprep.subr.bf16.mxu0 0
        %1793 = vmatpush1.bf16.msra.mxu0 0
        %1794 = vmatprep.subr.bf16.mxu0 0
        %1795 = vmatpush1.bf16.msra.mxu0 0
        %1796 = vmatprep.subr.bf16.mxu0 0
        %1797 = vmatpush1.bf16.msra.mxu0 0
        %1798 = vmatprep.subr.bf16.mxu0 0
        %1799 = vmatpush1.bf16.msra.mxu0 0
        %1800 = vmatprep.subr.bf16.mxu0 0
        %1801 = vmatpush1.bf16.msra.mxu0 0
        %1802 = vmatprep.subr.bf16.mxu0 0
        %1803 = vmatpush1.bf16.msra.mxu0 0
        %1804 = vmatprep.subr.bf16.mxu0 0
        %1805 = vmatpush1.bf16.msra.mxu0 0
        %1806 = vmatprep.subr.bf16.mxu0 0
        %1807 = vmatpush1.bf16.msra.mxu0 0
        %1808 = vmatprep.mubr.bf16.mxu0 0
        %1809 = vmatmul.mubr.bf16.gmra.mrb[0].mxu0 %v1774
        %v1810 = vpop.f32.mrb[0].mxu0
        %v1811 = vadd.f32 %v1759, %v1810
        %v1812 = vpop.f32.mrb[0].mxu0
        %v1813 = vpop.f32.mrb[0].mxu0
        %v1814 = vpop.f32.mrb[0].mxu0
        %1815 = vdwg.mxu0
        %v1816 = vmax.f32 %v1811, 0.0
        %v1817 = vpack.c.bf16 %v1816, %v1816
        %v1818 = vld [vmem:[#allocation8] sm:$0xf]
        %v1819 = vld [vmem:[#allocation8 + $0x4] sm:$0xf]
        %v1820 = vld [vmem:[#allocation8 + $0x8] sm:$0xf]
        %v1821 = vld [vmem:[#allocation8 + $0xc] sm:$0xf]
        %v1822 = vld [vmem:[%s9] sm:$0x1]
        %v1824 = vlaneseq
        %v1825 = vshrl.u32 %v1824, 7
        %v1826 = vsub.s32 0, %v1825
        %v1827 = vrot.slane %v1822, %v1826
        %v1833 = vunpack.c.l.b16 %v1818
        %v1834 = vunpack.c.l.b16 %v1819
        %v1835 = vunpack.c.l.b16 %v1820
        %v1836 = vunpack.c.l.b16 %v1821
        %v1837 = vpack.c.b16 %v1834, %v1833
        %v1838 = vpack.c.b16 %v1836, %v1835
        %v1842 = vsel %vm567, %v1817, 0
        %1844 = vmatprep.subr.bf16.mxu0 0
        %1845 = vmatpush1.bf16.msra.mxu0 %v1837
        %1846 = vmatprep.subr.bf16.mxu0 0
        %1847 = vmatpush1.bf16.msra.mxu0 %v1838
        %1848 = vmatprep.subr.bf16.mxu0 0
        %1849 = vmatpush1.bf16.msra.mxu0 0
        %1850 = vmatprep.subr.bf16.mxu0 0
        %1851 = vmatpush1.bf16.msra.mxu0 0
        %1852 = vmatprep.subr.bf16.mxu0 0
        %1853 = vmatpush1.bf16.msra.mxu0 0
        %1854 = vmatprep.subr.bf16.mxu0 0
        %1855 = vmatpush1.bf16.msra.mxu0 0
        %1856 = vmatprep.subr.bf16.mxu0 0
        %1857 = vmatpush1.bf16.msra.mxu0 0
        %1858 = vmatprep.subr.bf16.mxu0 0
        %1859 = vmatpush1.bf16.msra.mxu0 0
        %1860 = vmatprep.subr.bf16.mxu0 0
        %1861 = vmatpush1.bf16.msra.mxu0 0
        %1862 = vmatprep.subr.bf16.mxu0 0
        %1863 = vmatpush1.bf16.msra.mxu0 0
        %1864 = vmatprep.subr.bf16.mxu0 0
        %1865 = vmatpush1.bf16.msra.mxu0 0
        %1866 = vmatprep.subr.bf16.mxu0 0
        %1867 = vmatpush1.bf16.msra.mxu0 0
        %1868 = vmatprep.subr.bf16.mxu0 0
        %1869 = vmatpush1.bf16.msra.mxu0 0
        %1870 = vmatprep.subr.bf16.mxu0 0
        %1871 = vmatpush1.bf16.msra.mxu0 0
        %1872 = vmatprep.subr.bf16.mxu0 0
        %1873 = vmatpush1.bf16.msra.mxu0 0
        %1874 = vmatprep.subr.bf16.mxu0 0
        %1875 = vmatpush1.bf16.msra.mxu0 0
        %1876 = vmatprep.mubr.bf16.mxu0 0
        %1877 = vmatmul.mubr.bf16.gmra.mrb[0].mxu0 %v1842
        %v1878 = vpop.f32.mrb[0].mxu0
        %v1879 = vadd.f32 %v1827, %v1878
        %v1880 = vpop.f32.mrb[0].mxu0
        %v1881 = vpop.f32.mrb[0].mxu0
        %v1882 = vpop.f32.mrb[0].mxu0
        %1883 = vdwg.mxu0
        %v1884 = vadd.f32 %v1879, %v1748
        %v1885 = vld [vmem:[%s12] sm:$0x1]
        %v1886 = vld [vmem:[%s13] sm:$0x1]
        %v1887 = vsel %vm567, %v1884, 0.0
        %1888 = vadd.xlane.f32.xlu0 %v1887
        %v1889 = vpop.xlane.xlu0 %1888
        %v1890 = vmul.f32 %v1889, %v1724
        %v1891 = vsub.f32 %v1884, %v1890
        %v1892 = vmul.f32 %v1891, %v1891
        %v1893 = vsel %vm567, %v1892, 0.0
        %1894 = vadd.xlane.f32.xlu0 %v1893
        %v1895 = vpop.xlane.xlu0 %1894
        %v1896 = vmul.f32 %v1895, %v1724
        %v1897 = vadd.f32 %v1896, 1e-05
        %v1898 = vrsqrt.pop %v1897
        %v1899 = vmul.f32 %v1891, %v1898
        %v1901 = vlaneseq
        %v1902 = vshrl.u32 %v1901, 7
        %v1903 = vsub.s32 0, %v1902
        %v1904 = vrot.slane %v1885, %v1903
        %v1906 = vmul.f32 %v1899, %v1904
        %v1908 = vlaneseq
        %v1909 = vshrl.u32 %v1908, 7
        %v1910 = vsub.s32 0, %v1909
        %v1911 = vrot.slane %v1886, %v1910
        %v1913 = vadd.f32 %v1906, %v1911
        %1914 = vst.msk [vmem:[%s537] sm:$0xff] %vm567, %v1913
        %s1915 = sand.u32 %s345, 1
        %s1916 = scalar_lea.sflag [#allocation4], %s1915
        %s1917 = sand.u32 %s345, 1
        %s1918 = smul.addr %s1917, 8
        %s1919 = scalar_lea.vmem [#allocation10], %s1918
        // Predicated region
        $region93: #{tpu_custom_call.1} parent=75 // pred_check
          %p1920 = pneg %p355
        $region94: #{tpu_custom_call.1} parent=75 // pred_check_branch
          %1922 = sbr.rel (%p1920) target = $region96
        $region95: #{tpu_custom_call.1} parent=75 // pred_region
          %s1924 = ssub.s32 128, 128
          %1925 = vsyncadd %s1916, %s1924
          %s1926 = smul.addr %s33, 128
          %s1927 = scalar_lea.hbm %s14, %s1926
          %s1929 = sshll.u32 %s1919, 4
          %s1930 = int_to_ptr.vmem [resolvable:$true] %s1929
          %1932 = dma.vmem_to_hbm [thread:$0]  %s1930, 128, %s1927, %s1916
        $region96: #{tpu_custom_call.1} parent=75 // pred_fallthru
          _
      $region76: #{tpu_custom_call.1} parent=5 // pred_fallthru
        _
      %p1933 = scmp.le.s32.totalorder 2, %s28
      // Predicated region
      $region97: #{tpu_custom_call.1} parent=5 // pred_check
        %p1934 = pneg %p1933
      $region98: #{tpu_custom_call.1} parent=5 // pred_check_branch
        %1936 = sbr.rel (%p1934) target = $region100
      $region99: #{tpu_custom_call.1} parent=5 // pred_region
        %s1937 = ssub.s32 %s28, 2
        // Predicated region
        $region101: #{tpu_custom_call.1} parent=99 // pred_check
          %p1938 = pneg %p361
        $region102: #{tpu_custom_call.1} parent=99 // pred_check_branch
          %1940 = sbr.rel (%p1938) target = $region104
        $region103: #{tpu_custom_call.1} parent=99 // pred_region
          %s1941 = sand.u32 %s346, 1
          %s1942 = scalar_lea.sflag [#allocation4], %s1941
          %s1943 = sand.u32 %s346, 1
          %s1944 = smul.addr %s1943, 8
          %s1945 = scalar_lea.vmem [#allocation10], %s1944
          %1946 = dma.done %s1942, 128
        $region104: #{tpu_custom_call.1} parent=99 // pred_fallthru
          _
      $region100: #{tpu_custom_call.1} parent=5 // pred_fallthru
        _
    $region6: #{tpu_custom_call.1} parent=1 // loop_footer
      %s32 = sadd.s32 1, %s28
    $region7: #{tpu_custom_call.1} parent=1 // loop_footer_branch
      %27 = sbr.rel target = $region3
    $region8: #{tpu_custom_call.1} parent=1 // loop_exit
      _
    %1947 = vsyncpa [#allocation3], 1
    %s1948 = scalar_lea.sflag [#allocation3], 1
    %1949 = vsyncpa %s1948, 1
    %1950 = vsyncpa [#allocation6], 1
    %1951 = vsyncpa [#allocation9], 1
    %1952 = vsyncpa [#allocation4], 1
    %s1953 = scalar_lea.sflag [#allocation4], 1
    %1954 = vsyncpa %s1953, 1

</llo_original>
